<compile_context>
chip_gen: v7x
topology: tpu7x:2x2x1
jax: 0.10.0
libtpu: 0.0.40
codegen_flags: <defaults>
</compile_context>

<pallas_src>
import functools
import math

import jax
import jax.numpy as jnp
from jax import lax
from jax.experimental import pallas as pl
from jax.experimental.pallas import tpu as pltpu


_SQRT_HALF = 1.0 / math.sqrt(2.0)
# Conservative per-step VMEM budget: fits v7x's 32 MiB scoped default with headroom.
_VMEM_BUDGET = 24 * 1024 * 1024


# ---- Pallas kernel -----------------------------------------------------------
def _switch_kernel(x_ref, w1_ref, g_ref, b_ref, w2_ref, b2_ref, s_ref, h_ref,
                   o_ref, *, eps):
    x = x_ref[...]                                                    # (tm, 2m), native dtype

    # Linear(2m -> 4m, bias=False): MXU in native dtype, f32 accumulation.
    y = jnp.dot(x, w1_ref[...], preferred_element_type=jnp.float32)  # (tm, 4m) f32

    # LayerNorm(4m) with one-pass statistics: var = E[y^2] - mu^2.
    mu = jnp.mean(y, axis=-1, keepdims=True)
    msq = jnp.mean(y * y, axis=-1, keepdims=True)
    var = jnp.maximum(msq - mu * mu, 0.0)
    yln = (y - mu) * lax.rsqrt(var + eps)
    yln = yln * g_ref[...].astype(jnp.float32) + b_ref[...].astype(jnp.float32)

    # GELU, exact erf form (matches torch.nn.GELU default).
    yg = 0.5 * yln * (1.0 + lax.erf(yln * _SQRT_HALF))

    # Linear(4m -> 2m, bias=True): cast activation to the weight dtype so bf16
    # weights stay a single MXU pass; accumulate in f32.
    c = jnp.dot(yg.astype(w2_ref.dtype), w2_ref[...],
                preferred_element_type=jnp.float32)
    c = c + b2_ref[...].astype(jnp.float32)

    # Gated residual: sigmoid(s) * x + h * c   (h is a scalar read from SMEM).
    gate = jax.nn.sigmoid(s_ref[...].astype(jnp.float32))
    out = gate * x.astype(jnp.float32) + h_ref[0] * c
    o_ref[...] = out.astype(o_ref.dtype)


# ---- tiling helpers ----------------------------------------------------------
def _choose_row_tile(M, per_row_bytes, row_budget):
    """Largest row tile that fits the VMEM budget while keeping >= 2 grid steps."""
    for tm in (512, 256, 128, 64, 32, 16, 8):
        if tm > 8 and M < 2 * tm:
            continue            # keep >= 2 grid steps (pipelining + v7x megacore)
        if tm * per_row_bytes <= row_budget:
            return tm
    return 8


def _build_call(M_pad, tm, two_m, four_m, out_dtype, eps, vmem_limit, cost,
                use_single_buffered_consts):
    const_kw = {}
    if use_single_buffered_consts and hasattr(pl, "Buffered"):
        # Grid-constant operands do not need a second pipeline buffer.
        const_kw = dict(pipeline_mode=pl.Buffered(1))

    in_specs = [
        pl.BlockSpec((tm, two_m), lambda i: (i, 0)),                   # x rows (tiled)
        pl.BlockSpec((two_m, four_m), lambda i: (0, 0), **const_kw),   # W1
        pl.BlockSpec((1, four_m), lambda i: (0, 0), **const_kw),       # LN gamma
        pl.BlockSpec((1, four_m), lambda i: (0, 0), **const_kw),       # LN beta
        pl.BlockSpec((four_m, two_m), lambda i: (0, 0), **const_kw),   # W2
        pl.BlockSpec((1, two_m), lambda i: (0, 0), **const_kw),        # b2
        pl.BlockSpec((1, two_m), lambda i: (0, 0), **const_kw),        # s (gate logits)
        pl.BlockSpec(memory_space=pltpu.MemorySpace.SMEM),             # h (scalar)
    ]
    return pl.pallas_call(
        functools.partial(_switch_kernel, eps=eps),
        out_shape=jax.ShapeDtypeStruct((M_pad, two_m), out_dtype),
        grid=(M_pad // tm,),
        in_specs=in_specs,
        out_specs=pl.BlockSpec((tm, two_m), lambda i: (i, 0)),
        compiler_params=pltpu.CompilerParams(
            dimension_semantics=("parallel",),
            vmem_limit_bytes=vmem_limit,
        ),
        cost_estimate=cost,
    )


# ---- wrapper -----------------------------------------------------------------
def switch_layer(x, w1, gamma, beta, w2, b2, s, h, *, eps=1e-5):
    """Pallas implementation of SwitchLayer.forward for x of shape (B, L, m).

    Weight layout: w1 is (2m, 4m), w2 is (4m, 2m) (input-major).  PyTorch's
    nn.Linear stores (out_features, in_features), so transpose when porting a
    torch state dict.
    """
    B, L, m = x.shape
    assert L % 2 == 0, "sequence length must be even (SwitchLayer pairs positions)"
    two_m, four_m = 2 * m, 4 * m
    M = B * (L // 2)

    # The module's .view() calls are contiguous reshapes -> free outside the kernel.
    xr = x.reshape(M, two_m)
    g2 = gamma.reshape(1, four_m)
    be2 = beta.reshape(1, four_m)
    bias2 = b2.reshape(1, two_m)
    s2 = s.reshape(1, two_m)
    h1 = h.reshape(1).astype(jnp.float32)

    # ---- explicit VMEM budget -> row tile, padded grid, vmem_limit_bytes.
    w_isz = w1.dtype.itemsize
    x_isz = x.dtype.itemsize
    o_isz = x.dtype.itemsize
    fixed_bytes = 2 * ((two_m * four_m + four_m * two_m) * w_isz
                       + (2 * four_m + 2 * two_m) * 4)          # weight/vector buffers
    per_row_bytes = (2 * two_m * (x_isz + o_isz)                # double-buffered in/out tiles
                     + (3 * four_m + 2 * two_m) * 4)            # live f32 temporaries
    row_budget = max(_VMEM_BUDGET - fixed_bytes, 4 * 1024 * 1024)
    tm = _choose_row_tile(M, per_row_bytes, row_budget)

    grid_m = max(2, pl.cdiv(M, tm))     # >= 2 grid steps so both v7x TCs get work
    M_pad = grid_m * tm
    if M_pad != M:
        xr = jnp.pad(xr, ((0, M_pad - M), (0, 0)))

    footprint = fixed_bytes + tm * per_row_bytes
    vmem_limit = int(min(64 * 1024 * 1024,
                         max(32 * 1024 * 1024, 2 * footprint + (4 << 20))))

    cost = pl.CostEstimate(
        flops=4 * M * two_m * four_m,                 # two (M,2m)x(2m,4m)-sized matmuls
        transcendentals=M * (four_m + two_m),         # erf + sigmoid
        bytes_accessed=(2 * M * two_m * x_isz
                        + (w1.size + w2.size) * w_isz
                        + (g2.size + be2.size) * gamma.dtype.itemsize
                        + (bias2.size + s2.size) * b2.dtype.itemsize + 4),
    )

    args = (xr, w1, g2, be2, w2, bias2, s2, h1)
    try:
        out = _build_call(M_pad, tm, two_m, four_m, x.dtype, eps, vmem_limit,
                          cost, True)(*args)
    except Exception:
        # Fallback for JAX versions whose TPU lowering rejects single-buffered
        # (pipeline_mode=pl.Buffered(1)) constant blocks.
        out = _build_call(M_pad, tm, two_m, four_m, x.dtype, eps, vmem_limit,
                          cost, False)(*args)

    return out[:M].reshape(B, L, m)


# ---- reference (pure JAX, mirrors the PyTorch module) ------------------------
def switch_layer_ref(x, w1, gamma, beta, w2, b2, s, h, eps=1e-5):
    B, L, m = x.shape
    xr = x.reshape(B, L // 2, 2 * m)
    y = xr @ w1
    mu = y.mean(-1, keepdims=True)
    var = ((y - mu) ** 2).mean(-1, keepdims=True)
    yln = (y - mu) / jnp.sqrt(var + eps) * gamma + beta
    yg = 0.5 * yln * (1.0 + lax.erf(yln / jnp.sqrt(2.0)))
    c = yg @ w2 + b2
    out = jax.nn.sigmoid(s) * xr + h * c
    return out.reshape(B, L, m)


if __name__ == "__main__":
    key = jax.random.PRNGKey(0)
    B, L, m = 2, 8, 32          # batch=2, seq=8, hidden=32  ->  2m=64, 4m=128
    r = 0.9

    k1, k2, k3, k4 = jax.random.split(key, 4)
    x = jax.random.normal(k1, (B, L, m), dtype=jnp.float32)
    w1 = jax.random.normal(k2, (2 * m, 4 * m), dtype=jnp.float32) / math.sqrt(2 * m)
    w2 = jax.random.normal(k3, (4 * m, 2 * m), dtype=jnp.float32) / math.sqrt(4 * m)
    b2 = jax.random.normal(k4, (2 * m,), dtype=jnp.float32) * 0.02
    gamma = jnp.ones((4 * m,), dtype=jnp.float32)        # LayerNorm default init
    beta = jnp.zeros((4 * m,), dtype=jnp.float32)
    s = jnp.full((2 * m,), math.log(r / (1 - r)), dtype=jnp.float32)
    h = jnp.full((1,), 0.25 * math.sqrt(1 - r ** 2), dtype=jnp.float32)

    out = jax.block_until_ready(switch_layer(x, w1, gamma, beta, w2, b2, s, h))
    ref = switch_layer_ref(x, w1, gamma, beta, w2, b2, s, h)

    assert out.shape == x.shape and out.dtype == x.dtype
    assert jnp.allclose(out, ref, atol=1e-4, rtol=1e-4), "SwitchLayer kernel mismatch"

    print("KERNEL_OK")
</pallas_src>

<mosaic_0001>
module attributes {stable_mosaic.version = 11 : i64} {
  func.func @_switch_kernel(%arg0: i32, %arg1: memref<8x64xf32, #tpu.memory_space<vmem>>, %arg2: memref<64x128xf32, #tpu.memory_space<vmem>>, %arg3: memref<1x128xf32, #tpu.memory_space<vmem>>, %arg4: memref<1x128xf32, #tpu.memory_space<vmem>>, %arg5: memref<128x64xf32, #tpu.memory_space<vmem>>, %arg6: memref<1x64xf32, #tpu.memory_space<vmem>>, %arg7: memref<1x64xf32, #tpu.memory_space<vmem>>, %arg8: memref<1xf32, #tpu.memory_space<smem>>, %arg9: memref<8x64xf32, #tpu.memory_space<vmem>>) attributes {dimension_semantics = [#tpu.dimension_semantics<parallel>], iteration_bounds = array<i64: 2>, scalar_prefetch = 0 : i64, scratch_operands = 0 : i64, tpu.core_type = #tpu.core_type<tc>, window_params = [{transform_indices = @transform_0, window_bounds = array<i64: 8, 64>}, {pipeline_mode = #tpu.pipeline_mode<synchronous>, transform_indices = @transform_1, window_bounds = array<i64: 64, 128>}, {pipeline_mode = #tpu.pipeline_mode<synchronous>, transform_indices = @transform_2, window_bounds = array<i64: 1, 128>}, {pipeline_mode = #tpu.pipeline_mode<synchronous>, transform_indices = @transform_3, window_bounds = array<i64: 1, 128>}, {pipeline_mode = #tpu.pipeline_mode<synchronous>, transform_indices = @transform_4, window_bounds = array<i64: 128, 64>}, {pipeline_mode = #tpu.pipeline_mode<synchronous>, transform_indices = @transform_5, window_bounds = array<i64: 1, 64>}, {pipeline_mode = #tpu.pipeline_mode<synchronous>, transform_indices = @transform_6, window_bounds = array<i64: 1, 64>}, {transform_indices = @transform_7, window_bounds = array<i64: 1>}, {transform_indices = @transform_8, window_bounds = array<i64: 8, 64>}]} {
    %c0 = arith.constant 0 : index
    %c0_0 = arith.constant 0 : index
    %0 = vector.load %arg1[%c0, %c0_0] : memref<8x64xf32, #tpu.memory_space<vmem>>, vector<8x64xf32>
    %c0_1 = arith.constant 0 : index
    %c0_2 = arith.constant 0 : index
    %1 = vector.load %arg2[%c0_1, %c0_2] : memref<64x128xf32, #tpu.memory_space<vmem>>, vector<64x128xf32>
    %cst = arith.constant dense<0.000000e+00> : vector<8x128xf32>
    %2 = tpu.matmul %0, %1, %cst {dimension_numbers = #tpu.dot_dimension_numbers<[1], [0], [0], [1], [0, 0, 1, 1], [], []>} : vector<8x64xf32>, vector<64x128xf32>, vector<8x128xf32> -> vector<8x128xf32>
    %cst_3 = arith.constant dense<0.000000e+00> : vector<8xf32>
    %3 = vector.multi_reduction <add>, %2, %cst_3 [1] : vector<8x128xf32> to vector<8xf32>
    %4 = vector.shape_cast %3 : vector<8xf32> to vector<8x1xf32>
    %cst_4 = arith.constant 1.280000e+02 : f32
    %5 = vector.broadcast %cst_4 : f32 to vector<8x1xf32>
    %6 = arith.divf %4, %5 : vector<8x1xf32>
    %7 = arith.mulf %2, %2 : vector<8x128xf32>
    %cst_5 = arith.constant dense<0.000000e+00> : vector<8xf32>
    %8 = vector.multi_reduction <add>, %7, %cst_5 [1] : vector<8x128xf32> to vector<8xf32>
    %9 = vector.shape_cast %8 : vector<8xf32> to vector<8x1xf32>
    %cst_6 = arith.constant 1.280000e+02 : f32
    %10 = vector.broadcast %cst_6 : f32 to vector<8x1xf32>
    %11 = arith.divf %9, %10 : vector<8x1xf32>
    %12 = arith.mulf %6, %6 : vector<8x1xf32>
    %13 = arith.subf %11, %12 : vector<8x1xf32>
    %cst_7 = arith.constant 0.000000e+00 : f32
    %14 = vector.broadcast %cst_7 : f32 to vector<8x1xf32>
    %15 = arith.maximumf %13, %14 : vector<8x1xf32>
    %16 = vector.broadcast %6 : vector<8x1xf32> to vector<8x128xf32>
    %17 = arith.subf %2, %16 : vector<8x128xf32>
    %cst_8 = arith.constant 9.99999974E-6 : f32
    %18 = vector.broadcast %cst_8 : f32 to vector<8x1xf32>
    %19 = arith.addf %15, %18 : vector<8x1xf32>
    %20 = math.rsqrt %19 : vector<8x1xf32>
    %21 = vector.broadcast %20 : vector<8x1xf32> to vector<8x128xf32>
    %22 = arith.mulf %17, %21 : vector<8x128xf32>
    %c0_9 = arith.constant 0 : index
    %c0_10 = arith.constant 0 : index
    %23 = vector.load %arg3[%c0_9, %c0_10] : memref<1x128xf32, #tpu.memory_space<vmem>>, vector<1x128xf32>
    %24 = vector.broadcast %23 : vector<1x128xf32> to vector<8x128xf32>
    %25 = arith.mulf %22, %24 : vector<8x128xf32>
    %c0_11 = arith.constant 0 : index
    %c0_12 = arith.constant 0 : index
    %26 = vector.load %arg4[%c0_11, %c0_12] : memref<1x128xf32, #tpu.memory_space<vmem>>, vector<1x128xf32>
    %27 = vector.broadcast %26 : vector<1x128xf32> to vector<8x128xf32>
    %28 = arith.addf %25, %27 : vector<8x128xf32>
    %cst_13 = arith.constant 5.000000e-01 : f32
    %29 = vector.broadcast %cst_13 : f32 to vector<8x128xf32>
    %30 = arith.mulf %29, %28 : vector<8x128xf32>
    %cst_14 = arith.constant 0.707106769 : f32
    %31 = vector.broadcast %cst_14 : f32 to vector<8x128xf32>
    %32 = arith.mulf %28, %31 : vector<8x128xf32>
    %33 = math.erf %32 : vector<8x128xf32>
    %cst_15 = arith.constant 1.000000e+00 : f32
    %34 = vector.broadcast %cst_15 : f32 to vector<8x128xf32>
    %35 = arith.addf %34, %33 : vector<8x128xf32>
    %36 = arith.mulf %30, %35 : vector<8x128xf32>
    %c0_16 = arith.constant 0 : index
    %c0_17 = arith.constant 0 : index
    %37 = vector.load %arg5[%c0_16, %c0_17] : memref<128x64xf32, #tpu.memory_space<vmem>>, vector<128x64xf32>
    %cst_18 = arith.constant dense<0.000000e+00> : vector<8x64xf32>
    %38 = tpu.matmul %36, %37, %cst_18 {dimension_numbers = #tpu.dot_dimension_numbers<[1], [0], [0], [1], [0, 0, 1, 1], [], []>} : vector<8x128xf32>, vector<128x64xf32>, vector<8x64xf32> -> vector<8x64xf32>
    %c0_19 = arith.constant 0 : index
    %c0_20 = arith.constant 0 : index
    %39 = vector.load %arg6[%c0_19, %c0_20] : memref<1x64xf32, #tpu.memory_space<vmem>>, vector<1x64xf32>
    %40 = vector.broadcast %39 : vector<1x64xf32> to vector<8x64xf32>
    %41 = arith.addf %38, %40 : vector<8x64xf32>
    %c0_21 = arith.constant 0 : index
    %c0_22 = arith.constant 0 : index
    %42 = vector.load %arg7[%c0_21, %c0_22] : memref<1x64xf32, #tpu.memory_space<vmem>>, vector<1x64xf32>
    %43 = arith.negf %42 : vector<1x64xf32>
    %44 = math.exp %43 : vector<1x64xf32>
    %cst_23 = arith.constant 1.000000e+00 : f32
    %45 = vector.broadcast %cst_23 : f32 to vector<1x64xf32>
    %46 = arith.addf %45, %44 : vector<1x64xf32>
    %47 = arith.divf %45, %46 : vector<1x64xf32>
    %48 = vector.broadcast %47 : vector<1x64xf32> to vector<8x64xf32>
    %49 = arith.mulf %48, %0 : vector<8x64xf32>
    %c0_24 = arith.constant 0 : index
    %50 = memref.load %arg8[%c0_24] : memref<1xf32, #tpu.memory_space<smem>>
    %51 = vector.broadcast %50 : f32 to vector<8x64xf32>
    %52 = arith.mulf %51, %41 : vector<8x64xf32>
    %53 = arith.addf %49, %52 : vector<8x64xf32>
    %c0_25 = arith.constant 0 : index
    %c0_26 = arith.constant 0 : index
    %54 = vector.load %arg9[%c0_25, %c0_26] : memref<8x64xf32, #tpu.memory_space<vmem>>, vector<8x64xf32>
    tpu.vector_store %arg9[%c0_25, %c0_26], %53 {strides = array<i32>} : memref<8x64xf32, #tpu.memory_space<vmem>>, vector<8x64xf32>,
    return
  }
  func.func @transform_0(%arg0: i32) -> (i32, i32) {
    %c0_i32 = arith.constant 0 : i32
    %c0_i32_0 = arith.constant 0 : i32
    return %arg0, %c0_i32 : i32, i32
  }
  func.func @transform_1(%arg0: i32) -> (i32, i32) {
    %c0_i32 = arith.constant 0 : i32
    %c0_i32_0 = arith.constant 0 : i32
    %c0_i32_1 = arith.constant 0 : i32
    return %c0_i32, %c0_i32_0 : i32, i32
  }
  func.func @transform_2(%arg0: i32) -> (i32, i32) {
    %c0_i32 = arith.constant 0 : i32
    %c0_i32_0 = arith.constant 0 : i32
    %c0_i32_1 = arith.constant 0 : i32
    return %c0_i32, %c0_i32_0 : i32, i32
  }
  func.func @transform_3(%arg0: i32) -> (i32, i32) {
    %c0_i32 = arith.constant 0 : i32
    %c0_i32_0 = arith.constant 0 : i32
    %c0_i32_1 = arith.constant 0 : i32
    return %c0_i32, %c0_i32_0 : i32, i32
  }
  func.func @transform_4(%arg0: i32) -> (i32, i32) {
    %c0_i32 = arith.constant 0 : i32
    %c0_i32_0 = arith.constant 0 : i32
    %c0_i32_1 = arith.constant 0 : i32
    return %c0_i32, %c0_i32_0 : i32, i32
  }
  func.func @transform_5(%arg0: i32) -> (i32, i32) {
    %c0_i32 = arith.constant 0 : i32
    %c0_i32_0 = arith.constant 0 : i32
    %c0_i32_1 = arith.constant 0 : i32
    return %c0_i32, %c0_i32_0 : i32, i32
  }
  func.func @transform_6(%arg0: i32) -> (i32, i32) {
    %c0_i32 = arith.constant 0 : i32
    %c0_i32_0 = arith.constant 0 : i32
    %c0_i32_1 = arith.constant 0 : i32
    return %c0_i32, %c0_i32_0 : i32, i32
  }
  func.func @transform_7(%arg0: i32) -> i32 {
    %c0_i32 = arith.constant 0 : i32
    %c0_i32_0 = arith.constant 0 : i32
    return %c0_i32 : i32
  }
  func.func @transform_8(%arg0: i32) -> (i32, i32) {
    %c0_i32 = arith.constant 0 : i32
    %c0_i32_0 = arith.constant 0 : i32
    return %arg0, %c0_i32 : i32, i32
  }
}

module attributes {stable_mosaic.version = 11 : i64} {
  func.func @_switch_kernel(%arg0: i32, %arg1: memref<8x64xf32, #tpu.memory_space<vmem>>, %arg2: memref<64x128xf32, #tpu.memory_space<vmem>>, %arg3: memref<1x128xf32, #tpu.memory_space<vmem>>, %arg4: memref<1x128xf32, #tpu.memory_space<vmem>>, %arg5: memref<128x64xf32, #tpu.memory_space<vmem>>, %arg6: memref<1x64xf32, #tpu.memory_space<vmem>>, %arg7: memref<1x64xf32, #tpu.memory_space<vmem>>, %arg8: memref<1xf32, #tpu.memory_space<smem>>, %arg9: memref<8x64xf32, #tpu.memory_space<vmem>>) attributes {dimension_semantics = [#tpu.dimension_semantics<parallel>], iteration_bounds = array<i64: 2>, scalar_prefetch = 0 : i64, scratch_operands = 0 : i64, tpu.core_type = #tpu.core_type<tc>, window_params = [{transform_indices = @transform_0, window_bounds = array<i64: 8, 64>}, {pipeline_mode = #tpu.pipeline_mode<synchronous>, transform_indices = @transform_1, window_bounds = array<i64: 64, 128>}, {pipeline_mode = #tpu.pipeline_mode<synchronous>, transform_indices = @transform_2, window_bounds = array<i64: 1, 128>}, {pipeline_mode = #tpu.pipeline_mode<synchronous>, transform_indices = @transform_3, window_bounds = array<i64: 1, 128>}, {pipeline_mode = #tpu.pipeline_mode<synchronous>, transform_indices = @transform_4, window_bounds = array<i64: 128, 64>}, {pipeline_mode = #tpu.pipeline_mode<synchronous>, transform_indices = @transform_5, window_bounds = array<i64: 1, 64>}, {pipeline_mode = #tpu.pipeline_mode<synchronous>, transform_indices = @transform_6, window_bounds = array<i64: 1, 64>}, {transform_indices = @transform_7, window_bounds = array<i64: 1>}, {transform_indices = @transform_8, window_bounds = array<i64: 8, 64>}]} {
    %c0 = arith.constant 0 : index
    %c0_0 = arith.constant 0 : index
    %0 = vector.load %arg1[%c0, %c0_0] : memref<8x64xf32, #tpu.memory_space<vmem>>, vector<8x64xf32>
    %c0_1 = arith.constant 0 : index
    %c0_2 = arith.constant 0 : index
    %1 = vector.load %arg2[%c0_1, %c0_2] : memref<64x128xf32, #tpu.memory_space<vmem>>, vector<64x128xf32>
    %cst = arith.constant dense<0.000000e+00> : vector<8x128xf32>
    %2 = tpu.matmul %0, %1, %cst {dimension_numbers = #tpu.dot_dimension_numbers<[1], [0], [0], [1], [0, 0, 1, 1], [], []>} : vector<8x64xf32>, vector<64x128xf32>, vector<8x128xf32> -> vector<8x128xf32>
    %cst_3 = arith.constant dense<0.000000e+00> : vector<8xf32>
    %3 = vector.multi_reduction <add>, %2, %cst_3 [1] : vector<8x128xf32> to vector<8xf32>
    %4 = vector.shape_cast %3 : vector<8xf32> to vector<8x1xf32>
    %cst_4 = arith.constant 1.280000e+02 : f32
    %5 = vector.broadcast %cst_4 : f32 to vector<8x1xf32>
    %6 = arith.divf %4, %5 : vector<8x1xf32>
    %7 = arith.mulf %2, %2 : vector<8x128xf32>
    %cst_5 = arith.constant dense<0.000000e+00> : vector<8xf32>
    %8 = vector.multi_reduction <add>, %7, %cst_5 [1] : vector<8x128xf32> to vector<8xf32>
    %9 = vector.shape_cast %8 : vector<8xf32> to vector<8x1xf32>
    %cst_6 = arith.constant 1.280000e+02 : f32
    %10 = vector.broadcast %cst_6 : f32 to vector<8x1xf32>
    %11 = arith.divf %9, %10 : vector<8x1xf32>
    %12 = arith.mulf %6, %6 : vector<8x1xf32>
    %13 = arith.subf %11, %12 : vector<8x1xf32>
    %cst_7 = arith.constant 0.000000e+00 : f32
    %14 = vector.broadcast %cst_7 : f32 to vector<8x1xf32>
    %15 = arith.maximumf %13, %14 : vector<8x1xf32>
    %16 = vector.broadcast %6 : vector<8x1xf32> to vector<8x128xf32>
    %17 = arith.subf %2, %16 : vector<8x128xf32>
    %cst_8 = arith.constant 9.99999974E-6 : f32
    %18 = vector.broadcast %cst_8 : f32 to vector<8x1xf32>
    %19 = arith.addf %15, %18 : vector<8x1xf32>
    %20 = math.rsqrt %19 : vector<8x1xf32>
    %21 = vector.broadcast %20 : vector<8x1xf32> to vector<8x128xf32>
    %22 = arith.mulf %17, %21 : vector<8x128xf32>
    %c0_9 = arith.constant 0 : index
    %c0_10 = arith.constant 0 : index
    %23 = vector.load %arg3[%c0_9, %c0_10] : memref<1x128xf32, #tpu.memory_space<vmem>>, vector<1x128xf32>
    %24 = vector.broadcast %23 : vector<1x128xf32> to vector<8x128xf32>
    %25 = arith.mulf %22, %24 : vector<8x128xf32>
    %c0_11 = arith.constant 0 : index
    %c0_12 = arith.constant 0 : index
    %26 = vector.load %arg4[%c0_11, %c0_12] : memref<1x128xf32, #tpu.memory_space<vmem>>, vector<1x128xf32>
    %27 = vector.broadcast %26 : vector<1x128xf32> to vector<8x128xf32>
    %28 = arith.addf %25, %27 : vector<8x128xf32>
    %cst_13 = arith.constant 5.000000e-01 : f32
    %29 = vector.broadcast %cst_13 : f32 to vector<8x128xf32>
    %30 = arith.mulf %29, %28 : vector<8x128xf32>
    %cst_14 = arith.constant 0.707106769 : f32
    %31 = vector.broadcast %cst_14 : f32 to vector<8x128xf32>
    %32 = arith.mulf %28, %31 : vector<8x128xf32>
    %33 = math.erf %32 : vector<8x128xf32>
    %cst_15 = arith.constant 1.000000e+00 : f32
    %34 = vector.broadcast %cst_15 : f32 to vector<8x128xf32>
    %35 = arith.addf %34, %33 : vector<8x128xf32>
    %36 = arith.mulf %30, %35 : vector<8x128xf32>
    %c0_16 = arith.constant 0 : index
    %c0_17 = arith.constant 0 : index
    %37 = vector.load %arg5[%c0_16, %c0_17] : memref<128x64xf32, #tpu.memory_space<vmem>>, vector<128x64xf32>
    %cst_18 = arith.constant dense<0.000000e+00> : vector<8x64xf32>
    %38 = tpu.matmul %36, %37, %cst_18 {dimension_numbers = #tpu.dot_dimension_numbers<[1], [0], [0], [1], [0, 0, 1, 1], [], []>} : vector<8x128xf32>, vector<128x64xf32>, vector<8x64xf32> -> vector<8x64xf32>
    %c0_19 = arith.constant 0 : index
    %c0_20 = arith.constant 0 : index
    %39 = vector.load %arg6[%c0_19, %c0_20] : memref<1x64xf32, #tpu.memory_space<vmem>>, vector<1x64xf32>
    %40 = vector.broadcast %39 : vector<1x64xf32> to vector<8x64xf32>
    %41 = arith.addf %38, %40 : vector<8x64xf32>
    %c0_21 = arith.constant 0 : index
    %c0_22 = arith.constant 0 : index
    %42 = vector.load %arg7[%c0_21, %c0_22] : memref<1x64xf32, #tpu.memory_space<vmem>>, vector<1x64xf32>
    %43 = arith.negf %42 : vector<1x64xf32>
    %44 = math.exp %43 : vector<1x64xf32>
    %cst_23 = arith.constant 1.000000e+00 : f32
    %45 = vector.broadcast %cst_23 : f32 to vector<1x64xf32>
    %46 = arith.addf %45, %44 : vector<1x64xf32>
    %47 = arith.divf %45, %46 : vector<1x64xf32>
    %48 = vector.broadcast %47 : vector<1x64xf32> to vector<8x64xf32>
    %49 = arith.mulf %48, %0 : vector<8x64xf32>
    %c0_24 = arith.constant 0 : index
    %50 = memref.load %arg8[%c0_24] : memref<1xf32, #tpu.memory_space<smem>>
    %51 = vector.broadcast %50 : f32 to vector<8x64xf32>
    %52 = arith.mulf %51, %41 : vector<8x64xf32>
    %53 = arith.addf %49, %52 : vector<8x64xf32>
    %c0_25 = arith.constant 0 : index
    %c0_26 = arith.constant 0 : index
    %54 = vector.load %arg9[%c0_25, %c0_26] : memref<8x64xf32, #tpu.memory_space<vmem>>, vector<8x64xf32>
    tpu.vector_store %arg9[%c0_25, %c0_26], %53 {strides = array<i32>} : memref<8x64xf32, #tpu.memory_space<vmem>>, vector<8x64xf32>,
    return
  }
  func.func @transform_0(%arg0: i32) -> (i32, i32) {
    %c0_i32 = arith.constant 0 : i32
    %c0_i32_0 = arith.constant 0 : i32
    return %arg0, %c0_i32 : i32, i32
  }
  func.func @transform_1(%arg0: i32) -> (i32, i32) {
    %c0_i32 = arith.constant 0 : i32
    %c0_i32_0 = arith.constant 0 : i32
    %c0_i32_1 = arith.constant 0 : i32
    return %c0_i32, %c0_i32_0 : i32, i32
  }
  func.func @transform_2(%arg0: i32) -> (i32, i32) {
    %c0_i32 = arith.constant 0 : i32
    %c0_i32_0 = arith.constant 0 : i32
    %c0_i32_1 = arith.constant 0 : i32
    return %c0_i32, %c0_i32_0 : i32, i32
  }
  func.func @transform_3(%arg0: i32) -> (i32, i32) {
    %c0_i32 = arith.constant 0 : i32
    %c0_i32_0 = arith.constant 0 : i32
    %c0_i32_1 = arith.constant 0 : i32
    return %c0_i32, %c0_i32_0 : i32, i32
  }
  func.func @transform_4(%arg0: i32) -> (i32, i32) {
    %c0_i32 = arith.constant 0 : i32
    %c0_i32_0 = arith.constant 0 : i32
    %c0_i32_1 = arith.constant 0 : i32
    return %c0_i32, %c0_i32_0 : i32, i32
  }
  func.func @transform_5(%arg0: i32) -> (i32, i32) {
    %c0_i32 = arith.constant 0 : i32
    %c0_i32_0 = arith.constant 0 : i32
    %c0_i32_1 = arith.constant 0 : i32
    return %c0_i32, %c0_i32_0 : i32, i32
  }
  func.func @transform_6(%arg0: i32) -> (i32, i32) {
    %c0_i32 = arith.constant 0 : i32
    %c0_i32_0 = arith.constant 0 : i32
    %c0_i32_1 = arith.constant 0 : i32
    return %c0_i32, %c0_i32_0 : i32, i32
  }
  func.func @transform_7(%arg0: i32) -> i32 {
    %c0_i32 = arith.constant 0 : i32
    %c0_i32_0 = arith.constant 0 : i32
    return %c0_i32 : i32
  }
  func.func @transform_8(%arg0: i32) -> (i32, i32) {
    %c0_i32 = arith.constant 0 : i32
    %c0_i32_0 = arith.constant 0 : i32
    return %arg0, %c0_i32 : i32, i32
  }
}

</mosaic_0001>

<llo_original>
// kernel: tpu_custom_call.1
$region0: #{tpu_custom_call.1}
  #allocation0 [shape = 'u32[]', space=smem, size = 0x4, offset = 0x4, fixed_abs, tag = 'smem constant byte address 0x4 - core index']
  #allocation1 [shape = 'u32[144,128]{1,0:T(1,128)}', space=vmem, size = 0x12000, scoped, tag = 'internal scratch']
  #allocation2 [shape = 'f32[1]{0:T(128)S(6)}', space=smem, size = 0x200, scoped, tag = 'scoped memory for tpu_custom_call.1']
  %s0 = inlined_call_operand.vmem [shape: f32[16,64], index: 0, kind: input, shape index: {}]
  %s1 = inlined_call_operand.vmem [shape: f32[64,128], index: 1, kind: input, shape index: {}]
  %s2 = inlined_call_operand.vmem [shape: f32[1,128], index: 2, kind: input, shape index: {}]
  %s3 = inlined_call_operand.vmem [shape: f32[1,128], index: 3, kind: input, shape index: {}]
  %s4 = inlined_call_operand.vmem [shape: f32[128,64], index: 4, kind: input, shape index: {}]
  %s5 = inlined_call_operand.vmem [shape: f32[1,64], index: 5, kind: input, shape index: {}]
  %s6 = inlined_call_operand.vmem [shape: f32[1,64], index: 6, kind: input, shape index: {}]
  %s7 = inlined_call_operand.<no memory space> [shape: f32[1], index: 7, kind: input, shape index: {}]
  %s8 = inlined_call_operand.hbm [shape: f32[16,64], index: 8, kind: output, shape index: {}]
  %s9 = sld [smem:[#allocation0]]
  $region65: #{tpu_custom_call.1} parent=0
    _
  %s11 = ssub.s32 1, %s9
  %s12 = scalar_select 0, %s11, %s9
  %13 = sst [smem:[#allocation2]] %s7
  $region1: #{tpu_custom_call.1} parent=0
    #allocation3 [shape = 'u8[8192]{0}', space=vmem, size = 0x2000, scoped, tag = 'output window, operand 0']
    #allocation4 [shape = 's32[2]{0}', space=sflag, size = 0x8, scoped, tag = 'scoped memory for tpu_custom_call.1']
    %14 = vsyncpa [#allocation4], 0
    %s15 = scalar_lea.sflag [#allocation4], 1
    %16 = vsyncpa %s15, 0
    loop: start=0, step=1, limit=4
    $region2: #{tpu_custom_call.1} parent=1 // loop_pre_header
      _
    $region3: #{tpu_custom_call.1} parent=1 // loop_header
      %s18 = sphi 0, %s22
      %p19 = scmp.ge.s32.totalorder %s18, 4
      %s28 = sphi 0, %s30
      %s31 = sphi 0, %s28
      %s32 = sphi 0, %s31
      %s48 = sphi 0, %s32
      %s52 = sphi 0, %s52
      %s54 = sphi 0, %s52
      %s55 = sphi 0, %s54
      %s69 = sphi 0, %s55
      %s73 = sphi 0, %s73
      %s75 = sphi 0, %s73
      %s76 = sphi 0, %s75
      %s90 = sphi 0, %s76
      %s94 = sphi 0, %s94
      %s96 = sphi 0, %s94
      %s97 = sphi 0, %s96
      %s111 = sphi 0, %s97
      %s115 = sphi 0, %s115
      %s117 = sphi 0, %s115
      %s118 = sphi 0, %s117
      %s132 = sphi 0, %s118
      %s136 = sphi 0, %s136
      %s138 = sphi 0, %s136
      %s139 = sphi 0, %s138
      %s153 = sphi 0, %s139
      %s157 = sphi 0, %s157
      %s159 = sphi 0, %s157
      %s160 = sphi 0, %s159
      %s174 = sphi 0, %s160
      %s178 = sphi 0, %s178
      %s180 = sphi 0, %s178
      %s181 = sphi 0, %s180
      %s195 = sphi 0, %s181
      %s201 = sphi 0, %s203
      %s204 = sphi 0, %s201
      %s205 = sphi 0, %s204
      %s221 = sphi 0, %s205
    $region4: #{tpu_custom_call.1} parent=1 // loop_header_branch
      %21 = sbr.rel (%p19) target = $region8
    $region5: #{tpu_custom_call.1} parent=1 // loop_body
      %s23 = ssub.s32 %s18, 1
      %s24 = ssub.s32 %s18, 2
      %s25 = sadd.s32 %s18, 1
      %s26 = ssub.s32 %s18, %s25
      %p27 = scmp.eq.s32.totalorder %s26, 0
      %s29 = sadd.s32 %s28, 1
      %s30 = scalar_select %p27, %s28, %s29
      %p33 = pneg %p27
      %p34 = scmp.eq.s32.totalorder %s18, 1
      %p35 = por %p33, %p34
      %p36 = scmp.ne.s32.totalorder %s28, %s31
      %p37 = scmp.eq.s32.totalorder %s18, 0
      %p38 = por %p36, %p37
      %p39 = scmp.ne.s32.totalorder %s28, %s31
      %p40 = scmp.eq.s32.totalorder %s23, 1
      %p41 = por %p39, %p40
      %p42 = scmp.ne.s32.totalorder %s31, %s32
      %p43 = scmp.eq.s32.totalorder %s23, 0
      %p44 = por %p42, %p43
      %p45 = scmp.ne.s32.totalorder %s31, %s32
      %p46 = scmp.eq.s32.totalorder %s24, 1
      %p47 = por %p45, %p46
      %p49 = scmp.ne.s32.totalorder %s32, %s48
      %p50 = scmp.eq.s32.totalorder %s24, 0
      %p51 = por %p49, %p50
      %s53 = sadd.s32 %s52, 1
      %p56 = scmp.eq.s32.totalorder %s18, 1
      %p57 = scmp.ne.s32.totalorder %s52, %s54
      %p58 = scmp.eq.s32.totalorder %s18, 0
      %p59 = por %p57, %p58
      %p60 = scmp.ne.s32.totalorder %s52, %s54
      %p61 = scmp.eq.s32.totalorder %s23, 1
      %p62 = por %p60, %p61
      %p63 = scmp.ne.s32.totalorder %s54, %s55
      %p64 = scmp.eq.s32.totalorder %s23, 0
      %p65 = por %p63, %p64
      %p66 = scmp.ne.s32.totalorder %s54, %s55
      %p67 = scmp.eq.s32.totalorder %s24, 1
      %p68 = por %p66, %p67
      %p70 = scmp.ne.s32.totalorder %s55, %s69
      %p71 = scmp.eq.s32.totalorder %s24, 0
      %p72 = por %p70, %p71
      %s74 = sadd.s32 %s73, 1
      %p77 = scmp.eq.s32.totalorder %s18, 1
      %p78 = scmp.ne.s32.totalorder %s73, %s75
      %p79 = scmp.eq.s32.totalorder %s18, 0
      %p80 = por %p78, %p79
      %p81 = scmp.ne.s32.totalorder %s73, %s75
      %p82 = scmp.eq.s32.totalorder %s23, 1
      %p83 = por %p81, %p82
      %p84 = scmp.ne.s32.totalorder %s75, %s76
      %p85 = scmp.eq.s32.totalorder %s23, 0
      %p86 = por %p84, %p85
      %p87 = scmp.ne.s32.totalorder %s75, %s76
      %p88 = scmp.eq.s32.totalorder %s24, 1
      %p89 = por %p87, %p88
      %p91 = scmp.ne.s32.totalorder %s76, %s90
      %p92 = scmp.eq.s32.totalorder %s24, 0
      %p93 = por %p91, %p92
      %s95 = sadd.s32 %s94, 1
      %p98 = scmp.eq.s32.totalorder %s18, 1
      %p99 = scmp.ne.s32.totalorder %s94, %s96
      %p100 = scmp.eq.s32.totalorder %s18, 0
      %p101 = por %p99, %p100
      %p102 = scmp.ne.s32.totalorder %s94, %s96
      %p103 = scmp.eq.s32.totalorder %s23, 1
      %p104 = por %p102, %p103
      %p105 = scmp.ne.s32.totalorder %s96, %s97
      %p106 = scmp.eq.s32.totalorder %s23, 0
      %p107 = por %p105, %p106
      %p108 = scmp.ne.s32.totalorder %s96, %s97
      %p109 = scmp.eq.s32.totalorder %s24, 1
      %p110 = por %p108, %p109
      %p112 = scmp.ne.s32.totalorder %s97, %s111
      %p113 = scmp.eq.s32.totalorder %s24, 0
      %p114 = por %p112, %p113
      %s116 = sadd.s32 %s115, 1
      %p119 = scmp.eq.s32.totalorder %s18, 1
      %p120 = scmp.ne.s32.totalorder %s115, %s117
      %p121 = scmp.eq.s32.totalorder %s18, 0
      %p122 = por %p120, %p121
      %p123 = scmp.ne.s32.totalorder %s115, %s117
      %p124 = scmp.eq.s32.totalorder %s23, 1
      %p125 = por %p123, %p124
      %p126 = scmp.ne.s32.totalorder %s117, %s118
      %p127 = scmp.eq.s32.totalorder %s23, 0
      %p128 = por %p126, %p127
      %p129 = scmp.ne.s32.totalorder %s117, %s118
      %p130 = scmp.eq.s32.totalorder %s24, 1
      %p131 = por %p129, %p130
      %p133 = scmp.ne.s32.totalorder %s118, %s132
      %p134 = scmp.eq.s32.totalorder %s24, 0
      %p135 = por %p133, %p134
      %s137 = sadd.s32 %s136, 1
      %p140 = scmp.eq.s32.totalorder %s18, 1
      %p141 = scmp.ne.s32.totalorder %s136, %s138
      %p142 = scmp.eq.s32.totalorder %s18, 0
      %p143 = por %p141, %p142
      %p144 = scmp.ne.s32.totalorder %s136, %s138
      %p145 = scmp.eq.s32.totalorder %s23, 1
      %p146 = por %p144, %p145
      %p147 = scmp.ne.s32.totalorder %s138, %s139
      %p148 = scmp.eq.s32.totalorder %s23, 0
      %p149 = por %p147, %p148
      %p150 = scmp.ne.s32.totalorder %s138, %s139
      %p151 = scmp.eq.s32.totalorder %s24, 1
      %p152 = por %p150, %p151
      %p154 = scmp.ne.s32.totalorder %s139, %s153
      %p155 = scmp.eq.s32.totalorder %s24, 0
      %p156 = por %p154, %p155
      %s158 = sadd.s32 %s157, 1
      %p161 = scmp.eq.s32.totalorder %s18, 1
      %p162 = scmp.ne.s32.totalorder %s157, %s159
      %p163 = scmp.eq.s32.totalorder %s18, 0
      %p164 = por %p162, %p163
      %p165 = scmp.ne.s32.totalorder %s157, %s159
      %p166 = scmp.eq.s32.totalorder %s23, 1
      %p167 = por %p165, %p166
      %p168 = scmp.ne.s32.totalorder %s159, %s160
      %p169 = scmp.eq.s32.totalorder %s23, 0
      %p170 = por %p168, %p169
      %p171 = scmp.ne.s32.totalorder %s159, %s160
      %p172 = scmp.eq.s32.totalorder %s24, 1
      %p173 = por %p171, %p172
      %p175 = scmp.ne.s32.totalorder %s160, %s174
      %p176 = scmp.eq.s32.totalorder %s24, 0
      %p177 = por %p175, %p176
      %s179 = sadd.s32 %s178, 1
      %p182 = scmp.eq.s32.totalorder %s18, 1
      %p183 = scmp.ne.s32.totalorder %s178, %s180
      %p184 = scmp.eq.s32.totalorder %s18, 0
      %p185 = por %p183, %p184
      %p186 = scmp.ne.s32.totalorder %s178, %s180
      %p187 = scmp.eq.s32.totalorder %s23, 1
      %p188 = por %p186, %p187
      %p189 = scmp.ne.s32.totalorder %s180, %s181
      %p190 = scmp.eq.s32.totalorder %s23, 0
      %p191 = por %p189, %p190
      %p192 = scmp.ne.s32.totalorder %s180, %s181
      %p193 = scmp.eq.s32.totalorder %s24, 1
      %p194 = por %p192, %p193
      %p196 = scmp.ne.s32.totalorder %s181, %s195
      %p197 = scmp.eq.s32.totalorder %s24, 0
      %p198 = por %p196, %p197
      %s199 = ssub.s32 %s18, %s25
      %p200 = scmp.eq.s32.totalorder %s199, 0
      %s202 = sadd.s32 %s201, 1
      %s203 = scalar_select %p200, %s201, %s202
      %p206 = pneg %p200
      %p207 = scmp.eq.s32.totalorder %s18, 1
      %p208 = por %p206, %p207
      %p209 = scmp.ne.s32.totalorder %s201, %s204
      %p210 = scmp.eq.s32.totalorder %s18, 0
      %p211 = por %p209, %p210
      %p212 = scmp.ne.s32.totalorder %s201, %s204
      %p213 = scmp.eq.s32.totalorder %s23, 1
      %p214 = por %p212, %p213
      %p215 = scmp.ne.s32.totalorder %s204, %s205
      %p216 = scmp.eq.s32.totalorder %s23, 0
      %p217 = por %p215, %p216
      %p218 = scmp.ne.s32.totalorder %s204, %s205
      %p219 = scmp.eq.s32.totalorder %s24, 1
      %p220 = por %p218, %p219
      %p222 = scmp.ne.s32.totalorder %s205, %s221
      %p223 = scmp.eq.s32.totalorder %s24, 0
      %p224 = por %p222, %p223
      %p225 = scmp.le.s32.totalorder 1, %s18
      %p226 = scmp.lt.s32.totalorder %s18, 3
      %p227 = pnand %p225, %p226
      %p228 = pneg %p227
      // Predicated region
      $region9: #{tpu_custom_call.1} parent=5 // pred_check
        _
      $region10: #{tpu_custom_call.1} parent=5 // pred_check_branch
        %230 = sbr.rel (%p227) target = $region12
      $region11: #{tpu_custom_call.1} parent=5 // pred_region
        %s231 = ssub.s32 %s18, 1
        // Predicated region
        $region13: #{tpu_custom_call.1} parent=11 // pred_check
          %p232 = pneg %p65
        $region14: #{tpu_custom_call.1} parent=11 // pred_check_branch
          %234 = sbr.rel (%p232) target = $region16
        $region15: #{tpu_custom_call.1} parent=11 // pred_region
          _
        $region16: #{tpu_custom_call.1} parent=11 // pred_fallthru
          _
        // Predicated region
        $region17: #{tpu_custom_call.1} parent=11 // pred_check
          %p235 = pneg %p86
        $region18: #{tpu_custom_call.1} parent=11 // pred_check_branch
          %237 = sbr.rel (%p235) target = $region20
        $region19: #{tpu_custom_call.1} parent=11 // pred_region
          _
        $region20: #{tpu_custom_call.1} parent=11 // pred_fallthru
          _
        // Predicated region
        $region21: #{tpu_custom_call.1} parent=11 // pred_check
          %p238 = pneg %p107
        $region22: #{tpu_custom_call.1} parent=11 // pred_check_branch
          %240 = sbr.rel (%p238) target = $region24
        $region23: #{tpu_custom_call.1} parent=11 // pred_region
          _
        $region24: #{tpu_custom_call.1} parent=11 // pred_fallthru
          _
        // Predicated region
        $region25: #{tpu_custom_call.1} parent=11 // pred_check
          %p241 = pneg %p128
        $region26: #{tpu_custom_call.1} parent=11 // pred_check_branch
          %243 = sbr.rel (%p241) target = $region28
        $region27: #{tpu_custom_call.1} parent=11 // pred_region
          _
        $region28: #{tpu_custom_call.1} parent=11 // pred_fallthru
          _
        // Predicated region
        $region29: #{tpu_custom_call.1} parent=11 // pred_check
          %p244 = pneg %p149
        $region30: #{tpu_custom_call.1} parent=11 // pred_check_branch
          %246 = sbr.rel (%p244) target = $region32
        $region31: #{tpu_custom_call.1} parent=11 // pred_region
          _
        $region32: #{tpu_custom_call.1} parent=11 // pred_fallthru
          _
        // Predicated region
        $region33: #{tpu_custom_call.1} parent=11 // pred_check
          %p247 = pneg %p170
        $region34: #{tpu_custom_call.1} parent=11 // pred_check_branch
          %249 = sbr.rel (%p247) target = $region36
        $region35: #{tpu_custom_call.1} parent=11 // pred_region
          _
        $region36: #{tpu_custom_call.1} parent=11 // pred_fallthru
          _
        // Predicated region
        $region37: #{tpu_custom_call.1} parent=11 // pred_check
          %p250 = pneg %p191
        $region38: #{tpu_custom_call.1} parent=11 // pred_check_branch
          %252 = sbr.rel (%p250) target = $region40
        $region39: #{tpu_custom_call.1} parent=11 // pred_region
          _
        $region40: #{tpu_custom_call.1} parent=11 // pred_fallthru
          _
      $region12: #{tpu_custom_call.1} parent=5 // pred_fallthru
        _
      %p253 = scmp.lt.s32.totalorder %s18, 2
      // Predicated region
      $region41: #{tpu_custom_call.1} parent=5 // pred_check
        %p254 = pneg %p253
      $region42: #{tpu_custom_call.1} parent=5 // pred_check_branch
        %256 = sbr.rel (%p254) target = $region44
      $region43: #{tpu_custom_call.1} parent=5 // pred_region
        // Predicated region
        $region45: #{tpu_custom_call.1} parent=43 // pred_check
          %p257 = pneg %p38
        $region46: #{tpu_custom_call.1} parent=43 // pred_check_branch
          %259 = sbr.rel (%p257) target = $region48
        $region47: #{tpu_custom_call.1} parent=43 // pred_region
          %p260 = scmp.lt.s32.totalorder %s18, 1
          %s261 = scalar_select %p260, %s18, 1
          %s262 = smul.addr %s261, 8
          %s263 = scalar_lea.vmem %s0, %s262
        $region48: #{tpu_custom_call.1} parent=43 // pred_fallthru
          _
      $region44: #{tpu_custom_call.1} parent=5 // pred_fallthru
        _
      %p264 = scmp.le.s32.totalorder 1, %s18
      %p265 = scmp.lt.s32.totalorder %s18, 3
      %p266 = pnand %p264, %p265
      %p267 = pneg %p266
      // Predicated region
      $region49: #{tpu_custom_call.1} parent=5 // pred_check
        _
      $region50: #{tpu_custom_call.1} parent=5 // pred_check_branch
        %269 = sbr.rel (%p266) target = $region52
      $region51: #{tpu_custom_call.1} parent=5 // pred_region
        %s270 = ssub.s32 %s18, 1
        %p271 = scmp.lt.s32.totalorder %s23, 1
        %s272 = scalar_select %p271, %s23, 1
        %s273 = smul.addr %s272, 8
        %s274 = scalar_lea.vmem %s0, %s273
        %p275 = pneg %p44
        %p276 = pneg %p41
        %p277 = pneg %p65
        %p278 = pneg %p62
        %p279 = pneg %p86
        %p280 = pneg %p83
        %p281 = pneg %p107
        %p282 = pneg %p104
        %p283 = pneg %p128
        %p284 = pneg %p125
        %p285 = pneg %p149
        %p286 = pneg %p146
        %p287 = pneg %p170
        %p288 = pneg %p167
        %p289 = pneg %p191
        %p290 = pneg %p188
        %p291 = pneg %p217
        %p292 = pneg %p214
        %s293 = sand.u32 %s204, 1
        %s294 = scalar_lea.sflag [#allocation4], %s293
        %s295 = sand.u32 %s204, 1
        %s296 = smul.addr %s295, 8
        %s297 = scalar_lea.vmem [#allocation3], %s296
        %p298 = scmp.lt.s32.totalorder %s23, 1
        %s299 = scalar_select %p298, %s23, 1
        %s300 = smul.addr %s299, 8
        %s301 = scalar_lea.vmem %s0, %s300
        %v302 = vld [vmem:[%s301] sm:$0xff]
        %v303 = vld [vmem:[%s1] sm:$0xff]
        %v304 = vld [vmem:[%s1 + $0x8] sm:$0xff]
        %v305 = vld [vmem:[%s1 + $0x10] sm:$0xff]
        %v306 = vld [vmem:[%s1 + $0x18] sm:$0xff]
        %v307 = vld [vmem:[%s1 + $0x20] sm:$0xff]
        %v308 = vld [vmem:[%s1 + $0x28] sm:$0xff]
        %v309 = vld [vmem:[%s1 + $0x30] sm:$0xff]
        %v310 = vld [vmem:[%s1 + $0x38] sm:$0xff]
        %vm311 = vcmask 523264
        %v313 = vsel %vm311, %v302, 0
        %315 = vmatprep.subr.mxu0 0.0
        %316 = vmatpush1.msra.mxu0 %v303
        %317 = vmatprep.subr.mxu0 0.0
        %318 = vmatpush1.msra.mxu0 %v304
        %319 = vmatprep.subr.mxu0 0.0
        %320 = vmatpush1.msra.mxu0 %v305
        %321 = vmatprep.subr.mxu0 0.0
        %322 = vmatpush1.msra.mxu0 %v306
        %323 = vmatprep.subr.mxu0 0.0
        %324 = vmatpush1.msra.mxu0 %v307
        %325 = vmatprep.subr.mxu0 0.0
        %326 = vmatpush1.msra.mxu0 %v308
        %327 = vmatprep.subr.mxu0 0.0
        %328 = vmatpush1.msra.mxu0 %v309
        %329 = vmatprep.subr.mxu0 0.0
        %330 = vmatpush1.msra.mxu0 %v310
        %331 = vmatprep.subr.mxu0 0.0
        %332 = vmatpush1.msra.mxu0 0.0
        %333 = vmatprep.subr.mxu0 0.0
        %334 = vmatpush1.msra.mxu0 0.0
        %335 = vmatprep.subr.mxu0 0.0
        %336 = vmatpush1.msra.mxu0 0.0
        %337 = vmatprep.subr.mxu0 0.0
        %338 = vmatpush1.msra.mxu0 0.0
        %339 = vmatprep.subr.mxu0 0.0
        %340 = vmatpush1.msra.mxu0 0.0
        %341 = vmatprep.subr.mxu0 0.0
        %342 = vmatpush1.msra.mxu0 0.0
        %343 = vmatprep.subr.mxu0 0.0
        %344 = vmatpush1.msra.mxu0 0.0
        %345 = vmatprep.subr.mxu0 0.0
        %346 = vmatpush1.msra.mxu0 0.0
        %347 = vmatprep.subr.mxu0 0.0
        %348 = vmatpush1.msra.mxu0 0.0
        %349 = vmatprep.subr.mxu0 0.0
        %350 = vmatpush1.msra.mxu0 0.0
        %351 = vmatprep.subr.mxu0 0.0
        %352 = vmatpush1.msra.mxu0 0.0
        %353 = vmatprep.subr.mxu0 0.0
        %354 = vmatpush1.msra.mxu0 0.0
        %355 = vmatprep.subr.mxu0 0.0
        %356 = vmatpush1.msra.mxu0 0.0
        %357 = vmatprep.subr.mxu0 0.0
        %358 = vmatpush1.msra.mxu0 0.0
        %359 = vmatprep.subr.mxu0 0.0
        %360 = vmatpush1.msra.mxu0 0.0
        %361 = vmatprep.subr.mxu0 0.0
        %362 = vmatpush1.msra.mxu0 0.0
        %363 = vmatprep.subr.mxu0 0.0
        %364 = vmatpush1.msra.mxu0 0.0
        %365 = vmatprep.subr.mxu0 0.0
        %366 = vmatpush1.msra.mxu0 0.0
        %367 = vmatprep.subr.mxu0 0.0
        %368 = vmatpush1.msra.mxu0 0.0
        %369 = vmatprep.subr.mxu0 0.0
        %370 = vmatpush1.msra.mxu0 0.0
        %371 = vmatprep.subr.mxu0 0.0
        %372 = vmatpush1.msra.mxu0 0.0
        %373 = vmatprep.subr.mxu0 0.0
        %374 = vmatpush1.msra.mxu0 0.0
        %375 = vmatprep.subr.mxu0 0.0
        %376 = vmatpush1.msra.mxu0 0.0
        %377 = vmatprep.subr.mxu0 0.0
        %378 = vmatpush1.msra.mxu0 0.0
        %379 = vmatprep.mubr.f32.mxu0 0.0
        %380 = vmatmul.mubr.f32.gmra.mrb[0].mxu0 %v313
        %v381 = vpop.f32.mrb[0].mxu0
        %v382 = vadd.f32 0.0, %v381
        %v383 = vpop.f32.mrb[0].mxu0
        %384 = vdwg.mxu0
        %385 = vadd.xlane.f32.xlu0 %v382
        %v386 = vpop.xlane.xlu0 %385
        %v387 = vrcp.pop 128.0
        %v388 = vmul.f32 %v386, %v387
        %v389 = vmul.f32 %v382, %v382
        %390 = vadd.xlane.f32.xlu0 %v389
        %v391 = vpop.xlane.xlu0 %390
        %v392 = vmul.f32 %v391, %v387
        %v393 = vmul.f32 %v388, %v388
        %v394 = vsub.f32 %v392, %v393
        %v395 = vmax.f32 %v394, 0.0
        %v396 = vsub.f32 %v382, %v388
        %v397 = vadd.f32 %v395, 1e-05
        %v398 = vrsqrt.pop %v397
        %v399 = vmul.f32 %v396, %v398
        %v400 = vld [vmem:[%s2] sm:$0x1]
        %v402 = vlaneseq
        %v403 = vshrl.u32 %v402, 7
        %v404 = vsub.s32 0, %v403
        %v405 = vrot.slane %v400, %v404
        %v407 = vmul.f32 %v399, %v405
        %v408 = vld [vmem:[%s3] sm:$0x1]
        %v410 = vlaneseq
        %v411 = vshrl.u32 %v410, 7
        %v412 = vsub.s32 0, %v411
        %v413 = vrot.slane %v408, %v412
        %v415 = vadd.f32 %v407, %v413
        %v416 = vmul.f32 %v415, 0.5
        %v417 = vmul.f32 %v415, 0.70710677
        %v418 = verf.f32.pop %v417
        %v419 = vadd.f32 %v418, 1.0
        %v420 = vmul.f32 %v416, %v419
        %v421 = vld [vmem:[%s4] sm:$0xff]
        %v422 = vld [vmem:[%s4 + $0x8] sm:$0xff]
        %v423 = vld [vmem:[%s4 + $0x10] sm:$0xff]
        %v424 = vld [vmem:[%s4 + $0x18] sm:$0xff]
        %v425 = vld [vmem:[%s4 + $0x20] sm:$0xff]
        %v426 = vld [vmem:[%s4 + $0x28] sm:$0xff]
        %v427 = vld [vmem:[%s4 + $0x30] sm:$0xff]
        %v428 = vld [vmem:[%s4 + $0x38] sm:$0xff]
        %v429 = vld [vmem:[%s4 + $0x40] sm:$0xff]
        %v430 = vld [vmem:[%s4 + $0x48] sm:$0xff]
        %v431 = vld [vmem:[%s4 + $0x50] sm:$0xff]
        %v432 = vld [vmem:[%s4 + $0x58] sm:$0xff]
        %v433 = vld [vmem:[%s4 + $0x60] sm:$0xff]
        %v434 = vld [vmem:[%s4 + $0x68] sm:$0xff]
        %v435 = vld [vmem:[%s4 + $0x70] sm:$0xff]
        %v436 = vld [vmem:[%s4 + $0x78] sm:$0xff]
        %v437 = vld [vmem:[%s5] sm:$0x1]
        %v439 = vlaneseq
        %v440 = vshrl.u32 %v439, 7
        %v441 = vsub.s32 0, %v440
        %v442 = vrot.slane %v437, %v441
        %444 = vmatprep.subr.mxu0 0.0
        %445 = vmatpush1.msra.mxu0 %v421
        %446 = vmatprep.subr.mxu0 0.0
        %447 = vmatpush1.msra.mxu0 %v422
        %448 = vmatprep.subr.mxu0 0.0
        %449 = vmatpush1.msra.mxu0 %v423
        %450 = vmatprep.subr.mxu0 0.0
        %451 = vmatpush1.msra.mxu0 %v424
        %452 = vmatprep.subr.mxu0 0.0
        %453 = vmatpush1.msra.mxu0 %v425
        %454 = vmatprep.subr.mxu0 0.0
        %455 = vmatpush1.msra.mxu0 %v426
        %456 = vmatprep.subr.mxu0 0.0
        %457 = vmatpush1.msra.mxu0 %v427
        %458 = vmatprep.subr.mxu0 0.0
        %459 = vmatpush1.msra.mxu0 %v428
        %460 = vmatprep.subr.mxu0 0.0
        %461 = vmatpush1.msra.mxu0 %v429
        %462 = vmatprep.subr.mxu0 0.0
        %463 = vmatpush1.msra.mxu0 %v430
        %464 = vmatprep.subr.mxu0 0.0
        %465 = vmatpush1.msra.mxu0 %v431
        %466 = vmatprep.subr.mxu0 0.0
        %467 = vmatpush1.msra.mxu0 %v432
        %468 = vmatprep.subr.mxu0 0.0
        %469 = vmatpush1.msra.mxu0 %v433
        %470 = vmatprep.subr.mxu0 0.0
        %471 = vmatpush1.msra.mxu0 %v434
        %472 = vmatprep.subr.mxu0 0.0
        %473 = vmatpush1.msra.mxu0 %v435
        %474 = vmatprep.subr.mxu0 0.0
        %475 = vmatpush1.msra.mxu0 %v436
        %476 = vmatprep.subr.mxu0 0.0
        %477 = vmatpush1.msra.mxu0 0.0
        %478 = vmatprep.subr.mxu0 0.0
        %479 = vmatpush1.msra.mxu0 0.0
        %480 = vmatprep.subr.mxu0 0.0
        %481 = vmatpush1.msra.mxu0 0.0
        %482 = vmatprep.subr.mxu0 0.0
        %483 = vmatpush1.msra.mxu0 0.0
        %484 = vmatprep.subr.mxu0 0.0
        %485 = vmatpush1.msra.mxu0 0.0
        %486 = vmatprep.subr.mxu0 0.0
        %487 = vmatpush1.msra.mxu0 0.0
        %488 = vmatprep.subr.mxu0 0.0
        %489 = vmatpush1.msra.mxu0 0.0
        %490 = vmatprep.subr.mxu0 0.0
        %491 = vmatpush1.msra.mxu0 0.0
        %492 = vmatprep.subr.mxu0 0.0
        %493 = vmatpush1.msra.mxu0 0.0
        %494 = vmatprep.subr.mxu0 0.0
        %495 = vmatpush1.msra.mxu0 0.0
        %496 = vmatprep.subr.mxu0 0.0
        %497 = vmatpush1.msra.mxu0 0.0
        %498 = vmatprep.subr.mxu0 0.0
        %499 = vmatpush1.msra.mxu0 0.0
        %500 = vmatprep.subr.mxu0 0.0
        %501 = vmatpush1.msra.mxu0 0.0
        %502 = vmatprep.subr.mxu0 0.0
        %503 = vmatpush1.msra.mxu0 0.0
        %504 = vmatprep.subr.mxu0 0.0
        %505 = vmatpush1.msra.mxu0 0.0
        %506 = vmatprep.subr.mxu0 0.0
        %507 = vmatpush1.msra.mxu0 0.0
        %508 = vmatprep.mubr.f32.mxu0 0.0
        %509 = vmatmul.mubr.f32.gmra.mrb[0].mxu0 %v420
        %v510 = vpop.f32.mrb[0].mxu0
        %v511 = vadd.f32 %v442, %v510
        %v512 = vpop.f32.mrb[0].mxu0
        %513 = vdwg.mxu0
        %v514 = vld [vmem:[%s6] sm:$0x1]
        %v515 = vxor.u32 %v514, 2147483648
        %v516 = vmul.f32 %v515, 1.442695
        %v517 = vpow.pop %v516
        %v518 = vadd.f32 %v517, 1.0
        %v519 = vrcp.pop %v518
        %v520 = vmul.f32 1.0, %v519
        %v522 = vlaneseq
        %v523 = vshrl.u32 %v522, 7
        %v524 = vsub.s32 0, %v523
        %v525 = vrot.slane %v520, %v524
        %v527 = vmul.f32 %v525, %v302
        %s528 = sld [smem:[#allocation2]]
        %v529 = vstv %s528
        %v530 = vmul.f32 %v529, %v511
        %v531 = vadd.f32 %v527, %v530
        %532 = vst.msk [vmem:[%s297] sm:$0xff] %vm311, %v531
        %s533 = sand.u32 %s204, 1
        %s534 = scalar_lea.sflag [#allocation4], %s533
        %s535 = sand.u32 %s204, 1
        %s536 = smul.addr %s535, 8
        %s537 = scalar_lea.vmem [#allocation3], %s536
        // Predicated region
        $region53: #{tpu_custom_call.1} parent=51 // pred_check
          %p538 = pneg %p214
        $region54: #{tpu_custom_call.1} parent=51 // pred_check_branch
          %540 = sbr.rel (%p538) target = $region56
        $region55: #{tpu_custom_call.1} parent=51 // pred_region
          %s542 = ssub.s32 128, 128
          %543 = vsyncadd %s534, %s542
          %s544 = smul.addr %s23, 128
          %s545 = scalar_lea.hbm %s8, %s544
          %s547 = sshll.u32 %s537, 4
          %s548 = int_to_ptr.vmem [resolvable:$true] %s547
          %550 = dma.vmem_to_hbm [thread:$0]  %s548, 128, %s545, %s534
        $region56: #{tpu_custom_call.1} parent=51 // pred_fallthru
          _
      $region52: #{tpu_custom_call.1} parent=5 // pred_fallthru
        _
      %p551 = scmp.le.s32.totalorder 2, %s18
      // Predicated region
      $region57: #{tpu_custom_call.1} parent=5 // pred_check
        %p552 = pneg %p551
      $region58: #{tpu_custom_call.1} parent=5 // pred_check_branch
        %554 = sbr.rel (%p552) target = $region60
      $region59: #{tpu_custom_call.1} parent=5 // pred_region
        %s555 = ssub.s32 %s18, 2
        // Predicated region
        $region61: #{tpu_custom_call.1} parent=59 // pred_check
          %p556 = pneg %p220
        $region62: #{tpu_custom_call.1} parent=59 // pred_check_branch
          %558 = sbr.rel (%p556) target = $region64
        $region63: #{tpu_custom_call.1} parent=59 // pred_region
          %s559 = sand.u32 %s205, 1
          %s560 = scalar_lea.sflag [#allocation4], %s559
          %s561 = sand.u32 %s205, 1
          %s562 = smul.addr %s561, 8
          %s563 = scalar_lea.vmem [#allocation3], %s562
          %564 = dma.done %s560, 128
        $region64: #{tpu_custom_call.1} parent=59 // pred_fallthru
          _
      $region60: #{tpu_custom_call.1} parent=5 // pred_fallthru
        _
    $region6: #{tpu_custom_call.1} parent=1 // loop_footer
      %s22 = sadd.s32 1, %s18
    $region7: #{tpu_custom_call.1} parent=1 // loop_footer_branch
      %17 = sbr.rel target = $region3
    $region8: #{tpu_custom_call.1} parent=1 // loop_exit
      _
    %565 = vsyncpa [#allocation4], 1
    %s566 = scalar_lea.sflag [#allocation4], 1
    %567 = vsyncpa %s566, 1

// kernel: tpu_custom_call.1
$region0: #{tpu_custom_call.1}
  #allocation0 [shape = 'u32[]', space=smem, size = 0x4, offset = 0x4, fixed_abs, tag = 'smem constant byte address 0x4 - core index']
  #allocation1 [shape = 'u32[144,128]{1,0:T(1,128)}', space=vmem, size = 0x12000, scoped, tag = 'internal scratch']
  #allocation2 [shape = 'f32[1]{0:T(128)S(6)}', space=smem, size = 0x200, scoped, tag = 'scoped memory for tpu_custom_call.1']
  %s0 = inlined_call_operand.vmem [shape: f32[16,64], index: 0, kind: input, shape index: {}]
  %s1 = inlined_call_operand.vmem [shape: f32[64,128], index: 1, kind: input, shape index: {}]
  %s2 = inlined_call_operand.vmem [shape: f32[1,128], index: 2, kind: input, shape index: {}]
  %s3 = inlined_call_operand.vmem [shape: f32[1,128], index: 3, kind: input, shape index: {}]
  %s4 = inlined_call_operand.vmem [shape: f32[128,64], index: 4, kind: input, shape index: {}]
  %s5 = inlined_call_operand.vmem [shape: f32[1,64], index: 5, kind: input, shape index: {}]
  %s6 = inlined_call_operand.vmem [shape: f32[1,64], index: 6, kind: input, shape index: {}]
  %s7 = inlined_call_operand.<no memory space> [shape: f32[1], index: 7, kind: input, shape index: {}]
  %s8 = inlined_call_operand.hbm [shape: f32[16,64], index: 8, kind: output, shape index: {}]
  %s9 = sld [smem:[#allocation0]]
  $region65: #{tpu_custom_call.1} parent=0
    _
  %s11 = ssub.s32 1, %s9
  %s12 = scalar_select 0, %s11, %s9
  %13 = sst [smem:[#allocation2]] %s7
  $region1: #{tpu_custom_call.1} parent=0
    #allocation3 [shape = 'u8[8192]{0}', space=vmem, size = 0x2000, scoped, tag = 'output window, operand 0']
    #allocation4 [shape = 's32[2]{0}', space=sflag, size = 0x8, scoped, tag = 'scoped memory for tpu_custom_call.1']
    %14 = vsyncpa [#allocation4], 0
    %s15 = scalar_lea.sflag [#allocation4], 1
    %16 = vsyncpa %s15, 0
    loop: start=0, step=1, limit=4
    $region2: #{tpu_custom_call.1} parent=1 // loop_pre_header
      _
    $region3: #{tpu_custom_call.1} parent=1 // loop_header
      %s18 = sphi 0, %s22
      %p19 = scmp.ge.s32.totalorder %s18, 4
      %s28 = sphi 0, %s30
      %s31 = sphi 0, %s28
      %s32 = sphi 0, %s31
      %s48 = sphi 0, %s32
      %s52 = sphi 0, %s52
      %s54 = sphi 0, %s52
      %s55 = sphi 0, %s54
      %s69 = sphi 0, %s55
      %s73 = sphi 0, %s73
      %s75 = sphi 0, %s73
      %s76 = sphi 0, %s75
      %s90 = sphi 0, %s76
      %s94 = sphi 0, %s94
      %s96 = sphi 0, %s94
      %s97 = sphi 0, %s96
      %s111 = sphi 0, %s97
      %s115 = sphi 0, %s115
      %s117 = sphi 0, %s115
      %s118 = sphi 0, %s117
      %s132 = sphi 0, %s118
      %s136 = sphi 0, %s136
      %s138 = sphi 0, %s136
      %s139 = sphi 0, %s138
      %s153 = sphi 0, %s139
      %s157 = sphi 0, %s157
      %s159 = sphi 0, %s157
      %s160 = sphi 0, %s159
      %s174 = sphi 0, %s160
      %s178 = sphi 0, %s178
      %s180 = sphi 0, %s178
      %s181 = sphi 0, %s180
      %s195 = sphi 0, %s181
      %s201 = sphi 0, %s203
      %s204 = sphi 0, %s201
      %s205 = sphi 0, %s204
      %s221 = sphi 0, %s205
    $region4: #{tpu_custom_call.1} parent=1 // loop_header_branch
      %21 = sbr.rel (%p19) target = $region8
    $region5: #{tpu_custom_call.1} parent=1 // loop_body
      %s23 = ssub.s32 %s18, 1
      %s24 = ssub.s32 %s18, 2
      %s25 = sadd.s32 %s18, 1
      %s26 = ssub.s32 %s18, %s25
      %p27 = scmp.eq.s32.totalorder %s26, 0
      %s29 = sadd.s32 %s28, 1
      %s30 = scalar_select %p27, %s28, %s29
      %p33 = pneg %p27
      %p34 = scmp.eq.s32.totalorder %s18, 1
      %p35 = por %p33, %p34
      %p36 = scmp.ne.s32.totalorder %s28, %s31
      %p37 = scmp.eq.s32.totalorder %s18, 0
      %p38 = por %p36, %p37
      %p39 = scmp.ne.s32.totalorder %s28, %s31
      %p40 = scmp.eq.s32.totalorder %s23, 1
      %p41 = por %p39, %p40
      %p42 = scmp.ne.s32.totalorder %s31, %s32
      %p43 = scmp.eq.s32.totalorder %s23, 0
      %p44 = por %p42, %p43
      %p45 = scmp.ne.s32.totalorder %s31, %s32
      %p46 = scmp.eq.s32.totalorder %s24, 1
      %p47 = por %p45, %p46
      %p49 = scmp.ne.s32.totalorder %s32, %s48
      %p50 = scmp.eq.s32.totalorder %s24, 0
      %p51 = por %p49, %p50
      %s53 = sadd.s32 %s52, 1
      %p56 = scmp.eq.s32.totalorder %s18, 1
      %p57 = scmp.ne.s32.totalorder %s52, %s54
      %p58 = scmp.eq.s32.totalorder %s18, 0
      %p59 = por %p57, %p58
      %p60 = scmp.ne.s32.totalorder %s52, %s54
      %p61 = scmp.eq.s32.totalorder %s23, 1
      %p62 = por %p60, %p61
      %p63 = scmp.ne.s32.totalorder %s54, %s55
      %p64 = scmp.eq.s32.totalorder %s23, 0
      %p65 = por %p63, %p64
      %p66 = scmp.ne.s32.totalorder %s54, %s55
      %p67 = scmp.eq.s32.totalorder %s24, 1
      %p68 = por %p66, %p67
      %p70 = scmp.ne.s32.totalorder %s55, %s69
      %p71 = scmp.eq.s32.totalorder %s24, 0
      %p72 = por %p70, %p71
      %s74 = sadd.s32 %s73, 1
      %p77 = scmp.eq.s32.totalorder %s18, 1
      %p78 = scmp.ne.s32.totalorder %s73, %s75
      %p79 = scmp.eq.s32.totalorder %s18, 0
      %p80 = por %p78, %p79
      %p81 = scmp.ne.s32.totalorder %s73, %s75
      %p82 = scmp.eq.s32.totalorder %s23, 1
      %p83 = por %p81, %p82
      %p84 = scmp.ne.s32.totalorder %s75, %s76
      %p85 = scmp.eq.s32.totalorder %s23, 0
      %p86 = por %p84, %p85
      %p87 = scmp.ne.s32.totalorder %s75, %s76
      %p88 = scmp.eq.s32.totalorder %s24, 1
      %p89 = por %p87, %p88
      %p91 = scmp.ne.s32.totalorder %s76, %s90
      %p92 = scmp.eq.s32.totalorder %s24, 0
      %p93 = por %p91, %p92
      %s95 = sadd.s32 %s94, 1
      %p98 = scmp.eq.s32.totalorder %s18, 1
      %p99 = scmp.ne.s32.totalorder %s94, %s96
      %p100 = scmp.eq.s32.totalorder %s18, 0
      %p101 = por %p99, %p100
      %p102 = scmp.ne.s32.totalorder %s94, %s96
      %p103 = scmp.eq.s32.totalorder %s23, 1
      %p104 = por %p102, %p103
      %p105 = scmp.ne.s32.totalorder %s96, %s97
      %p106 = scmp.eq.s32.totalorder %s23, 0
      %p107 = por %p105, %p106
      %p108 = scmp.ne.s32.totalorder %s96, %s97
      %p109 = scmp.eq.s32.totalorder %s24, 1
      %p110 = por %p108, %p109
      %p112 = scmp.ne.s32.totalorder %s97, %s111
      %p113 = scmp.eq.s32.totalorder %s24, 0
      %p114 = por %p112, %p113
      %s116 = sadd.s32 %s115, 1
      %p119 = scmp.eq.s32.totalorder %s18, 1
      %p120 = scmp.ne.s32.totalorder %s115, %s117
      %p121 = scmp.eq.s32.totalorder %s18, 0
      %p122 = por %p120, %p121
      %p123 = scmp.ne.s32.totalorder %s115, %s117
      %p124 = scmp.eq.s32.totalorder %s23, 1
      %p125 = por %p123, %p124
      %p126 = scmp.ne.s32.totalorder %s117, %s118
      %p127 = scmp.eq.s32.totalorder %s23, 0
      %p128 = por %p126, %p127
      %p129 = scmp.ne.s32.totalorder %s117, %s118
      %p130 = scmp.eq.s32.totalorder %s24, 1
      %p131 = por %p129, %p130
      %p133 = scmp.ne.s32.totalorder %s118, %s132
      %p134 = scmp.eq.s32.totalorder %s24, 0
      %p135 = por %p133, %p134
      %s137 = sadd.s32 %s136, 1
      %p140 = scmp.eq.s32.totalorder %s18, 1
      %p141 = scmp.ne.s32.totalorder %s136, %s138
      %p142 = scmp.eq.s32.totalorder %s18, 0
      %p143 = por %p141, %p142
      %p144 = scmp.ne.s32.totalorder %s136, %s138
      %p145 = scmp.eq.s32.totalorder %s23, 1
      %p146 = por %p144, %p145
      %p147 = scmp.ne.s32.totalorder %s138, %s139
      %p148 = scmp.eq.s32.totalorder %s23, 0
      %p149 = por %p147, %p148
      %p150 = scmp.ne.s32.totalorder %s138, %s139
      %p151 = scmp.eq.s32.totalorder %s24, 1
      %p152 = por %p150, %p151
      %p154 = scmp.ne.s32.totalorder %s139, %s153
      %p155 = scmp.eq.s32.totalorder %s24, 0
      %p156 = por %p154, %p155
      %s158 = sadd.s32 %s157, 1
      %p161 = scmp.eq.s32.totalorder %s18, 1
      %p162 = scmp.ne.s32.totalorder %s157, %s159
      %p163 = scmp.eq.s32.totalorder %s18, 0
      %p164 = por %p162, %p163
      %p165 = scmp.ne.s32.totalorder %s157, %s159
      %p166 = scmp.eq.s32.totalorder %s23, 1
      %p167 = por %p165, %p166
      %p168 = scmp.ne.s32.totalorder %s159, %s160
      %p169 = scmp.eq.s32.totalorder %s23, 0
      %p170 = por %p168, %p169
      %p171 = scmp.ne.s32.totalorder %s159, %s160
      %p172 = scmp.eq.s32.totalorder %s24, 1
      %p173 = por %p171, %p172
      %p175 = scmp.ne.s32.totalorder %s160, %s174
      %p176 = scmp.eq.s32.totalorder %s24, 0
      %p177 = por %p175, %p176
      %s179 = sadd.s32 %s178, 1
      %p182 = scmp.eq.s32.totalorder %s18, 1
      %p183 = scmp.ne.s32.totalorder %s178, %s180
      %p184 = scmp.eq.s32.totalorder %s18, 0
      %p185 = por %p183, %p184
      %p186 = scmp.ne.s32.totalorder %s178, %s180
      %p187 = scmp.eq.s32.totalorder %s23, 1
      %p188 = por %p186, %p187
      %p189 = scmp.ne.s32.totalorder %s180, %s181
      %p190 = scmp.eq.s32.totalorder %s23, 0
      %p191 = por %p189, %p190
      %p192 = scmp.ne.s32.totalorder %s180, %s181
      %p193 = scmp.eq.s32.totalorder %s24, 1
      %p194 = por %p192, %p193
      %p196 = scmp.ne.s32.totalorder %s181, %s195
      %p197 = scmp.eq.s32.totalorder %s24, 0
      %p198 = por %p196, %p197
      %s199 = ssub.s32 %s18, %s25
      %p200 = scmp.eq.s32.totalorder %s199, 0
      %s202 = sadd.s32 %s201, 1
      %s203 = scalar_select %p200, %s201, %s202
      %p206 = pneg %p200
      %p207 = scmp.eq.s32.totalorder %s18, 1
      %p208 = por %p206, %p207
      %p209 = scmp.ne.s32.totalorder %s201, %s204
      %p210 = scmp.eq.s32.totalorder %s18, 0
      %p211 = por %p209, %p210
      %p212 = scmp.ne.s32.totalorder %s201, %s204
      %p213 = scmp.eq.s32.totalorder %s23, 1
      %p214 = por %p212, %p213
      %p215 = scmp.ne.s32.totalorder %s204, %s205
      %p216 = scmp.eq.s32.totalorder %s23, 0
      %p217 = por %p215, %p216
      %p218 = scmp.ne.s32.totalorder %s204, %s205
      %p219 = scmp.eq.s32.totalorder %s24, 1
      %p220 = por %p218, %p219
      %p222 = scmp.ne.s32.totalorder %s205, %s221
      %p223 = scmp.eq.s32.totalorder %s24, 0
      %p224 = por %p222, %p223
      %p225 = scmp.le.s32.totalorder 1, %s18
      %p226 = scmp.lt.s32.totalorder %s18, 3
      %p227 = pnand %p225, %p226
      %p228 = pneg %p227
      // Predicated region
      $region9: #{tpu_custom_call.1} parent=5 // pred_check
        _
      $region10: #{tpu_custom_call.1} parent=5 // pred_check_branch
        %230 = sbr.rel (%p227) target = $region12
      $region11: #{tpu_custom_call.1} parent=5 // pred_region
        %s231 = ssub.s32 %s18, 1
        // Predicated region
        $region13: #{tpu_custom_call.1} parent=11 // pred_check
          %p232 = pneg %p65
        $region14: #{tpu_custom_call.1} parent=11 // pred_check_branch
          %234 = sbr.rel (%p232) target = $region16
        $region15: #{tpu_custom_call.1} parent=11 // pred_region
          _
        $region16: #{tpu_custom_call.1} parent=11 // pred_fallthru
          _
        // Predicated region
        $region17: #{tpu_custom_call.1} parent=11 // pred_check
          %p235 = pneg %p86
        $region18: #{tpu_custom_call.1} parent=11 // pred_check_branch
          %237 = sbr.rel (%p235) target = $region20
        $region19: #{tpu_custom_call.1} parent=11 // pred_region
          _
        $region20: #{tpu_custom_call.1} parent=11 // pred_fallthru
          _
        // Predicated region
        $region21: #{tpu_custom_call.1} parent=11 // pred_check
          %p238 = pneg %p107
        $region22: #{tpu_custom_call.1} parent=11 // pred_check_branch
          %240 = sbr.rel (%p238) target = $region24
        $region23: #{tpu_custom_call.1} parent=11 // pred_region
          _
        $region24: #{tpu_custom_call.1} parent=11 // pred_fallthru
          _
        // Predicated region
        $region25: #{tpu_custom_call.1} parent=11 // pred_check
          %p241 = pneg %p128
        $region26: #{tpu_custom_call.1} parent=11 // pred_check_branch
          %243 = sbr.rel (%p241) target = $region28
        $region27: #{tpu_custom_call.1} parent=11 // pred_region
          _
        $region28: #{tpu_custom_call.1} parent=11 // pred_fallthru
          _
        // Predicated region
        $region29: #{tpu_custom_call.1} parent=11 // pred_check
          %p244 = pneg %p149
        $region30: #{tpu_custom_call.1} parent=11 // pred_check_branch
          %246 = sbr.rel (%p244) target = $region32
        $region31: #{tpu_custom_call.1} parent=11 // pred_region
          _
        $region32: #{tpu_custom_call.1} parent=11 // pred_fallthru
          _
        // Predicated region
        $region33: #{tpu_custom_call.1} parent=11 // pred_check
          %p247 = pneg %p170
        $region34: #{tpu_custom_call.1} parent=11 // pred_check_branch
          %249 = sbr.rel (%p247) target = $region36
        $region35: #{tpu_custom_call.1} parent=11 // pred_region
          _
        $region36: #{tpu_custom_call.1} parent=11 // pred_fallthru
          _
        // Predicated region
        $region37: #{tpu_custom_call.1} parent=11 // pred_check
          %p250 = pneg %p191
        $region38: #{tpu_custom_call.1} parent=11 // pred_check_branch
          %252 = sbr.rel (%p250) target = $region40
        $region39: #{tpu_custom_call.1} parent=11 // pred_region
          _
        $region40: #{tpu_custom_call.1} parent=11 // pred_fallthru
          _
      $region12: #{tpu_custom_call.1} parent=5 // pred_fallthru
        _
      %p253 = scmp.lt.s32.totalorder %s18, 2
      // Predicated region
      $region41: #{tpu_custom_call.1} parent=5 // pred_check
        %p254 = pneg %p253
      $region42: #{tpu_custom_call.1} parent=5 // pred_check_branch
        %256 = sbr.rel (%p254) target = $region44
      $region43: #{tpu_custom_call.1} parent=5 // pred_region
        // Predicated region
        $region45: #{tpu_custom_call.1} parent=43 // pred_check
          %p257 = pneg %p38
        $region46: #{tpu_custom_call.1} parent=43 // pred_check_branch
          %259 = sbr.rel (%p257) target = $region48
        $region47: #{tpu_custom_call.1} parent=43 // pred_region
          %p260 = scmp.lt.s32.totalorder %s18, 1
          %s261 = scalar_select %p260, %s18, 1
          %s262 = smul.addr %s261, 8
          %s263 = scalar_lea.vmem %s0, %s262
        $region48: #{tpu_custom_call.1} parent=43 // pred_fallthru
          _
      $region44: #{tpu_custom_call.1} parent=5 // pred_fallthru
        _
      %p264 = scmp.le.s32.totalorder 1, %s18
      %p265 = scmp.lt.s32.totalorder %s18, 3
      %p266 = pnand %p264, %p265
      %p267 = pneg %p266
      // Predicated region
      $region49: #{tpu_custom_call.1} parent=5 // pred_check
        _
      $region50: #{tpu_custom_call.1} parent=5 // pred_check_branch
        %269 = sbr.rel (%p266) target = $region52
      $region51: #{tpu_custom_call.1} parent=5 // pred_region
        %s270 = ssub.s32 %s18, 1
        %p271 = scmp.lt.s32.totalorder %s23, 1
        %s272 = scalar_select %p271, %s23, 1
        %s273 = smul.addr %s272, 8
        %s274 = scalar_lea.vmem %s0, %s273
        %p275 = pneg %p44
        %p276 = pneg %p41
        %p277 = pneg %p65
        %p278 = pneg %p62
        %p279 = pneg %p86
        %p280 = pneg %p83
        %p281 = pneg %p107
        %p282 = pneg %p104
        %p283 = pneg %p128
        %p284 = pneg %p125
        %p285 = pneg %p149
        %p286 = pneg %p146
        %p287 = pneg %p170
        %p288 = pneg %p167
        %p289 = pneg %p191
        %p290 = pneg %p188
        %p291 = pneg %p217
        %p292 = pneg %p214
        %s293 = sand.u32 %s204, 1
        %s294 = scalar_lea.sflag [#allocation4], %s293
        %s295 = sand.u32 %s204, 1
        %s296 = smul.addr %s295, 8
        %s297 = scalar_lea.vmem [#allocation3], %s296
        %p298 = scmp.lt.s32.totalorder %s23, 1
        %s299 = scalar_select %p298, %s23, 1
        %s300 = smul.addr %s299, 8
        %s301 = scalar_lea.vmem %s0, %s300
        %v302 = vld [vmem:[%s301] sm:$0xff]
        %v303 = vld [vmem:[%s1] sm:$0xff]
        %v304 = vld [vmem:[%s1 + $0x8] sm:$0xff]
        %v305 = vld [vmem:[%s1 + $0x10] sm:$0xff]
        %v306 = vld [vmem:[%s1 + $0x18] sm:$0xff]
        %v307 = vld [vmem:[%s1 + $0x20] sm:$0xff]
        %v308 = vld [vmem:[%s1 + $0x28] sm:$0xff]
        %v309 = vld [vmem:[%s1 + $0x30] sm:$0xff]
        %v310 = vld [vmem:[%s1 + $0x38] sm:$0xff]
        %vm311 = vcmask 523264
        %v313 = vsel %vm311, %v302, 0
        %315 = vmatprep.subr.mxu0 0.0
        %316 = vmatpush1.msra.mxu0 %v303
        %317 = vmatprep.subr.mxu0 0.0
        %318 = vmatpush1.msra.mxu0 %v304
        %319 = vmatprep.subr.mxu0 0.0
        %320 = vmatpush1.msra.mxu0 %v305
        %321 = vmatprep.subr.mxu0 0.0
        %322 = vmatpush1.msra.mxu0 %v306
        %323 = vmatprep.subr.mxu0 0.0
        %324 = vmatpush1.msra.mxu0 %v307
        %325 = vmatprep.subr.mxu0 0.0
        %326 = vmatpush1.msra.mxu0 %v308
        %327 = vmatprep.subr.mxu0 0.0
        %328 = vmatpush1.msra.mxu0 %v309
        %329 = vmatprep.subr.mxu0 0.0
        %330 = vmatpush1.msra.mxu0 %v310
        %331 = vmatprep.subr.mxu0 0.0
        %332 = vmatpush1.msra.mxu0 0.0
        %333 = vmatprep.subr.mxu0 0.0
        %334 = vmatpush1.msra.mxu0 0.0
        %335 = vmatprep.subr.mxu0 0.0
        %336 = vmatpush1.msra.mxu0 0.0
        %337 = vmatprep.subr.mxu0 0.0
        %338 = vmatpush1.msra.mxu0 0.0
        %339 = vmatprep.subr.mxu0 0.0
        %340 = vmatpush1.msra.mxu0 0.0
        %341 = vmatprep.subr.mxu0 0.0
        %342 = vmatpush1.msra.mxu0 0.0
        %343 = vmatprep.subr.mxu0 0.0
        %344 = vmatpush1.msra.mxu0 0.0
        %345 = vmatprep.subr.mxu0 0.0
        %346 = vmatpush1.msra.mxu0 0.0
        %347 = vmatprep.subr.mxu0 0.0
        %348 = vmatpush1.msra.mxu0 0.0
        %349 = vmatprep.subr.mxu0 0.0
        %350 = vmatpush1.msra.mxu0 0.0
        %351 = vmatprep.subr.mxu0 0.0
        %352 = vmatpush1.msra.mxu0 0.0
        %353 = vmatprep.subr.mxu0 0.0
        %354 = vmatpush1.msra.mxu0 0.0
        %355 = vmatprep.subr.mxu0 0.0
        %356 = vmatpush1.msra.mxu0 0.0
        %357 = vmatprep.subr.mxu0 0.0
        %358 = vmatpush1.msra.mxu0 0.0
        %359 = vmatprep.subr.mxu0 0.0
        %360 = vmatpush1.msra.mxu0 0.0
        %361 = vmatprep.subr.mxu0 0.0
        %362 = vmatpush1.msra.mxu0 0.0
        %363 = vmatprep.subr.mxu0 0.0
        %364 = vmatpush1.msra.mxu0 0.0
        %365 = vmatprep.subr.mxu0 0.0
        %366 = vmatpush1.msra.mxu0 0.0
        %367 = vmatprep.subr.mxu0 0.0
        %368 = vmatpush1.msra.mxu0 0.0
        %369 = vmatprep.subr.mxu0 0.0
        %370 = vmatpush1.msra.mxu0 0.0
        %371 = vmatprep.subr.mxu0 0.0
        %372 = vmatpush1.msra.mxu0 0.0
        %373 = vmatprep.subr.mxu0 0.0
        %374 = vmatpush1.msra.mxu0 0.0
        %375 = vmatprep.subr.mxu0 0.0
        %376 = vmatpush1.msra.mxu0 0.0
        %377 = vmatprep.subr.mxu0 0.0
        %378 = vmatpush1.msra.mxu0 0.0
        %379 = vmatprep.mubr.f32.mxu0 0.0
        %380 = vmatmul.mubr.f32.gmra.mrb[0].mxu0 %v313
        %v381 = vpop.f32.mrb[0].mxu0
        %v382 = vadd.f32 0.0, %v381
        %v383 = vpop.f32.mrb[0].mxu0
        %384 = vdwg.mxu0
        %385 = vadd.xlane.f32.xlu0 %v382
        %v386 = vpop.xlane.xlu0 %385
        %v387 = vrcp.pop 128.0
        %v388 = vmul.f32 %v386, %v387
        %v389 = vmul.f32 %v382, %v382
        %390 = vadd.xlane.f32.xlu0 %v389
        %v391 = vpop.xlane.xlu0 %390
        %v392 = vmul.f32 %v391, %v387
        %v393 = vmul.f32 %v388, %v388
        %v394 = vsub.f32 %v392, %v393
        %v395 = vmax.f32 %v394, 0.0
        %v396 = vsub.f32 %v382, %v388
        %v397 = vadd.f32 %v395, 1e-05
        %v398 = vrsqrt.pop %v397
        %v399 = vmul.f32 %v396, %v398
        %v400 = vld [vmem:[%s2] sm:$0x1]
        %v402 = vlaneseq
        %v403 = vshrl.u32 %v402, 7
        %v404 = vsub.s32 0, %v403
        %v405 = vrot.slane %v400, %v404
        %v407 = vmul.f32 %v399, %v405
        %v408 = vld [vmem:[%s3] sm:$0x1]
        %v410 = vlaneseq
        %v411 = vshrl.u32 %v410, 7
        %v412 = vsub.s32 0, %v411
        %v413 = vrot.slane %v408, %v412
        %v415 = vadd.f32 %v407, %v413
        %v416 = vmul.f32 %v415, 0.5
        %v417 = vmul.f32 %v415, 0.70710677
        %v418 = verf.f32.pop %v417
        %v419 = vadd.f32 %v418, 1.0
        %v420 = vmul.f32 %v416, %v419
        %v421 = vld [vmem:[%s4] sm:$0xff]
        %v422 = vld [vmem:[%s4 + $0x8] sm:$0xff]
        %v423 = vld [vmem:[%s4 + $0x10] sm:$0xff]
        %v424 = vld [vmem:[%s4 + $0x18] sm:$0xff]
        %v425 = vld [vmem:[%s4 + $0x20] sm:$0xff]
        %v426 = vld [vmem:[%s4 + $0x28] sm:$0xff]
        %v427 = vld [vmem:[%s4 + $0x30] sm:$0xff]
        %v428 = vld [vmem:[%s4 + $0x38] sm:$0xff]
        %v429 = vld [vmem:[%s4 + $0x40] sm:$0xff]
        %v430 = vld [vmem:[%s4 + $0x48] sm:$0xff]
        %v431 = vld [vmem:[%s4 + $0x50] sm:$0xff]
        %v432 = vld [vmem:[%s4 + $0x58] sm:$0xff]
        %v433 = vld [vmem:[%s4 + $0x60] sm:$0xff]
        %v434 = vld [vmem:[%s4 + $0x68] sm:$0xff]
        %v435 = vld [vmem:[%s4 + $0x70] sm:$0xff]
        %v436 = vld [vmem:[%s4 + $0x78] sm:$0xff]
        %v437 = vld [vmem:[%s5] sm:$0x1]
        %v439 = vlaneseq
        %v440 = vshrl.u32 %v439, 7
        %v441 = vsub.s32 0, %v440
        %v442 = vrot.slane %v437, %v441
        %444 = vmatprep.subr.mxu0 0.0
        %445 = vmatpush1.msra.mxu0 %v421
        %446 = vmatprep.subr.mxu0 0.0
        %447 = vmatpush1.msra.mxu0 %v422
        %448 = vmatprep.subr.mxu0 0.0
        %449 = vmatpush1.msra.mxu0 %v423
        %450 = vmatprep.subr.mxu0 0.0
        %451 = vmatpush1.msra.mxu0 %v424
        %452 = vmatprep.subr.mxu0 0.0
        %453 = vmatpush1.msra.mxu0 %v425
        %454 = vmatprep.subr.mxu0 0.0
        %455 = vmatpush1.msra.mxu0 %v426
        %456 = vmatprep.subr.mxu0 0.0
        %457 = vmatpush1.msra.mxu0 %v427
        %458 = vmatprep.subr.mxu0 0.0
        %459 = vmatpush1.msra.mxu0 %v428
        %460 = vmatprep.subr.mxu0 0.0
        %461 = vmatpush1.msra.mxu0 %v429
        %462 = vmatprep.subr.mxu0 0.0
        %463 = vmatpush1.msra.mxu0 %v430
        %464 = vmatprep.subr.mxu0 0.0
        %465 = vmatpush1.msra.mxu0 %v431
        %466 = vmatprep.subr.mxu0 0.0
        %467 = vmatpush1.msra.mxu0 %v432
        %468 = vmatprep.subr.mxu0 0.0
        %469 = vmatpush1.msra.mxu0 %v433
        %470 = vmatprep.subr.mxu0 0.0
        %471 = vmatpush1.msra.mxu0 %v434
        %472 = vmatprep.subr.mxu0 0.0
        %473 = vmatpush1.msra.mxu0 %v435
        %474 = vmatprep.subr.mxu0 0.0
        %475 = vmatpush1.msra.mxu0 %v436
        %476 = vmatprep.subr.mxu0 0.0
        %477 = vmatpush1.msra.mxu0 0.0
        %478 = vmatprep.subr.mxu0 0.0
        %479 = vmatpush1.msra.mxu0 0.0
        %480 = vmatprep.subr.mxu0 0.0
        %481 = vmatpush1.msra.mxu0 0.0
        %482 = vmatprep.subr.mxu0 0.0
        %483 = vmatpush1.msra.mxu0 0.0
        %484 = vmatprep.subr.mxu0 0.0
        %485 = vmatpush1.msra.mxu0 0.0
        %486 = vmatprep.subr.mxu0 0.0
        %487 = vmatpush1.msra.mxu0 0.0
        %488 = vmatprep.subr.mxu0 0.0
        %489 = vmatpush1.msra.mxu0 0.0
        %490 = vmatprep.subr.mxu0 0.0
        %491 = vmatpush1.msra.mxu0 0.0
        %492 = vmatprep.subr.mxu0 0.0
        %493 = vmatpush1.msra.mxu0 0.0
        %494 = vmatprep.subr.mxu0 0.0
        %495 = vmatpush1.msra.mxu0 0.0
        %496 = vmatprep.subr.mxu0 0.0
        %497 = vmatpush1.msra.mxu0 0.0
        %498 = vmatprep.subr.mxu0 0.0
        %499 = vmatpush1.msra.mxu0 0.0
        %500 = vmatprep.subr.mxu0 0.0
        %501 = vmatpush1.msra.mxu0 0.0
        %502 = vmatprep.subr.mxu0 0.0
        %503 = vmatpush1.msra.mxu0 0.0
        %504 = vmatprep.subr.mxu0 0.0
        %505 = vmatpush1.msra.mxu0 0.0
        %506 = vmatprep.subr.mxu0 0.0
        %507 = vmatpush1.msra.mxu0 0.0
        %508 = vmatprep.mubr.f32.mxu0 0.0
        %509 = vmatmul.mubr.f32.gmra.mrb[0].mxu0 %v420
        %v510 = vpop.f32.mrb[0].mxu0
        %v511 = vadd.f32 %v442, %v510
        %v512 = vpop.f32.mrb[0].mxu0
        %513 = vdwg.mxu0
        %v514 = vld [vmem:[%s6] sm:$0x1]
        %v515 = vxor.u32 %v514, 2147483648
        %v516 = vmul.f32 %v515, 1.442695
        %v517 = vpow.pop %v516
        %v518 = vadd.f32 %v517, 1.0
        %v519 = vrcp.pop %v518
        %v520 = vmul.f32 1.0, %v519
        %v522 = vlaneseq
        %v523 = vshrl.u32 %v522, 7
        %v524 = vsub.s32 0, %v523
        %v525 = vrot.slane %v520, %v524
        %v527 = vmul.f32 %v525, %v302
        %s528 = sld [smem:[#allocation2]]
        %v529 = vstv %s528
        %v530 = vmul.f32 %v529, %v511
        %v531 = vadd.f32 %v527, %v530
        %532 = vst.msk [vmem:[%s297] sm:$0xff] %vm311, %v531
        %s533 = sand.u32 %s204, 1
        %s534 = scalar_lea.sflag [#allocation4], %s533
        %s535 = sand.u32 %s204, 1
        %s536 = smul.addr %s535, 8
        %s537 = scalar_lea.vmem [#allocation3], %s536
        // Predicated region
        $region53: #{tpu_custom_call.1} parent=51 // pred_check
          %p538 = pneg %p214
        $region54: #{tpu_custom_call.1} parent=51 // pred_check_branch
          %540 = sbr.rel (%p538) target = $region56
        $region55: #{tpu_custom_call.1} parent=51 // pred_region
          %s542 = ssub.s32 128, 128
          %543 = vsyncadd %s534, %s542
          %s544 = smul.addr %s23, 128
          %s545 = scalar_lea.hbm %s8, %s544
          %s547 = sshll.u32 %s537, 4
          %s548 = int_to_ptr.vmem [resolvable:$true] %s547
          %550 = dma.vmem_to_hbm [thread:$0]  %s548, 128, %s545, %s534
        $region56: #{tpu_custom_call.1} parent=51 // pred_fallthru
          _
      $region52: #{tpu_custom_call.1} parent=5 // pred_fallthru
        _
      %p551 = scmp.le.s32.totalorder 2, %s18
      // Predicated region
      $region57: #{tpu_custom_call.1} parent=5 // pred_check
        %p552 = pneg %p551
      $region58: #{tpu_custom_call.1} parent=5 // pred_check_branch
        %554 = sbr.rel (%p552) target = $region60
      $region59: #{tpu_custom_call.1} parent=5 // pred_region
        %s555 = ssub.s32 %s18, 2
        // Predicated region
        $region61: #{tpu_custom_call.1} parent=59 // pred_check
          %p556 = pneg %p220
        $region62: #{tpu_custom_call.1} parent=59 // pred_check_branch
          %558 = sbr.rel (%p556) target = $region64
        $region63: #{tpu_custom_call.1} parent=59 // pred_region
          %s559 = sand.u32 %s205, 1
          %s560 = scalar_lea.sflag [#allocation4], %s559
          %s561 = sand.u32 %s205, 1
          %s562 = smul.addr %s561, 8
          %s563 = scalar_lea.vmem [#allocation3], %s562
          %564 = dma.done %s560, 128
        $region64: #{tpu_custom_call.1} parent=59 // pred_fallthru
          _
      $region60: #{tpu_custom_call.1} parent=5 // pred_fallthru
        _
    $region6: #{tpu_custom_call.1} parent=1 // loop_footer
      %s22 = sadd.s32 1, %s18
    $region7: #{tpu_custom_call.1} parent=1 // loop_footer_branch
      %17 = sbr.rel target = $region3
    $region8: #{tpu_custom_call.1} parent=1 // loop_exit
      _
    %565 = vsyncpa [#allocation4], 1
    %s566 = scalar_lea.sflag [#allocation4], 1
    %567 = vsyncpa %s566, 1

</llo_original>
